<compile_context>
chip_gen: v6e
topology: v6e:2x2x1
jax: 0.10.0
libtpu: 0.0.40
codegen_flags: <defaults>
</compile_context>

<pallas_src>
import jax
import jax.numpy as jnp
import numpy as np
from jax import lax
from jax.experimental import pallas as pl
from jax.experimental.pallas import tpu as pltpu


def _feature_kernel(x1_ref, w1_ref, b1_ref, w2_ref, b2_ref, w3_ref, b3_ref,
                    fw_ref, fb_ref, o_ref):
    """One batch-block of the full forward pass (length-major activations).

    x1_ref: (L, BB, 5)      conv1 im2col'd input (taps in lanes, length-major)
    w1_ref: (5, 32)         conv1 weight (BN folded, taps flattened), b1_ref: (1, 32)
    w2_ref: (3, 32, 64)     conv2 weight kept per-tap (K, Cin, Cout),  b2_ref: (1, 64)
    w3_ref: (3, 64, 128)    conv3 weight kept per-tap (K, Cin, Cout),  b3_ref: (1, 128)
    fw_ref: (128, 512)      fc1 weight (transposed, 1/L pool factor folded), fb_ref: (1, 512)
    o_ref : (BB, 512)       L2-normalized features
    """
    L, BB, K1 = x1_ref.shape
    C1 = w1_ref.shape[1]    # 32

    # ---- conv1 (+BN folded) + ReLU: one (L*BB, 5) x (5, 32) MXU matmul --------
    x1 = x1_ref[...].reshape(L * BB, K1)
    h1 = jnp.dot(x1, w1_ref[...], preferred_element_type=jnp.float32) + b1_ref[...]
    h1 = jnp.maximum(h1, 0.0).reshape(L, BB, C1)

    def conv3_relu(h, w_ref, b_ref):
        """'same' 3-tap conv along leading axis as per-tap accumulated matmuls."""
        cin = h.shape[2]
        cout = w_ref.shape[2]
        hf = h.reshape(L * BB, cin)
        # center tap
        acc = jnp.dot(hf, w_ref[1], preferred_element_type=jnp.float32)
        acc = acc.reshape(L, BB, cout) + b_ref[...]
        if L > 1:
            # tap 0: out[l] += h[l-1] @ w[0]   (l >= 1)
            lo = jnp.dot(h[:L - 1].reshape((L - 1) * BB, cin), w_ref[0],
                         preferred_element_type=jnp.float32).reshape(L - 1, BB, cout)
            # tap 2: out[l] += h[l+1] @ w[2]   (l <= L-2)
            hi = jnp.dot(h[1:].reshape((L - 1) * BB, cin), w_ref[2],
                         preferred_element_type=jnp.float32).reshape(L - 1, BB, cout)
            z = jnp.zeros((1, BB, cout), jnp.float32)
            acc = acc + jnp.concatenate([z, lo], axis=0)   # aligned leading-axis shift
            acc = acc + jnp.concatenate([hi, z], axis=0)
        return jnp.maximum(acc, 0.0)

    h2 = conv3_relu(h1, w2_ref, b2_ref)                     # (L, BB, 64)
    h3 = conv3_relu(h2, w3_ref, b3_ref)                     # (L, BB, 128)

    # ---- adaptive avg pool (1/L folded into fw) -> fc1 -> L2 normalize --------
    pooled = jnp.sum(h3, axis=0)                            # (BB, 128), leading-axis sum
    feat = jnp.dot(pooled, fw_ref[...],
                   preferred_element_type=jnp.float32) + fb_ref[...]   # (BB, 512)
    ss = jnp.sum(feat * feat, axis=1, keepdims=True)
    # F.normalize(p=2, eps=1e-12): x / max(||x||, eps) == x * rsqrt(max(ss, eps^2))
    o_ref[...] = feat * lax.rsqrt(jnp.maximum(ss, 1e-24))


def _per_sample_vmem_bytes(L, C1=32, C2=64, C3=128, F=512):
    """Rough f32 VMEM working set per sample (used to size block_b)."""
    inp = 2 * L * 128 * 4                 # double-buffered im2col block (lane-padded)
    acts = L * (C1 + C2 + C3) * 4         # h1, h2, h3
    taps = L * 2 * (C2 + C3) * 4          # per-tap matmul temporaries
    outb = 2 * F * 4                      # double-buffered output block
    return inp + acts + taps + outb


def model_1_feature_forward(x_ncl, params, block_b=None):
    """x_ncl: (B, 1, L) float32 (PyTorch NCL layout). Returns (B, 512)."""
    (w1, b1), (w2, b2), (w3, b3), (fw, fb) = params
    x = x_ncl.astype(jnp.float32)[:, 0, :]                  # (B, L), Cin == 1
    B, L = x.shape
    K1 = w1.shape[0]
    pad1 = (K1 - 1) // 2
    F = fw.shape[1]

    # ---- pick batch block against an explicit VMEM budget (~24 MiB working set)
    if block_b is None:
        budget = 24 * 1024 * 1024
        block_b = min(256, max(8, budget // _per_sample_vmem_bytes(L)))
    block_b = max(8, (int(block_b) // 8) * 8)

    if B <= block_b:
        block_b = ((B + 7) // 8) * 8                        # whole (padded) batch, 1 step
        Bp = block_b
        nb = 1
    else:
        nb = -(-B // block_b)
        if nb % 2 == 1:
            nb += 1                                         # even #blocks for v7x's 2 TCs
        Bp = nb * block_b

    if Bp != B:
        x = jnp.pad(x, ((0, Bp - B), (0, 0)))

    # ---- wrapper-side layout staging only (all FLOPs stay in the kernel) ------
    xp = jnp.pad(x, ((0, 0), (pad1, pad1)))                 # (Bp, L + 2*pad1)
    x1 = jnp.stack([xp[:, k:k + L] for k in range(K1)], axis=-1)   # (Bp, L, K1)
    x1 = jnp.transpose(x1, (1, 0, 2))                       # (L, Bp, K1) length-major

    w1f = w1.reshape(K1, w1.shape[2])                       # (5, 32); Cin == 1
    fw_scaled = fw / jnp.float32(L)                         # fold 1/L of the avg pool

    def _resident(shape):                                   # VMEM-resident across steps
        return pl.BlockSpec(shape, lambda i, _n=len(shape): (0,) * _n)

    out = pl.pallas_call(
        _feature_kernel,
        out_shape=jax.ShapeDtypeStruct((Bp, F), jnp.float32),
        grid=(nb,),
        in_specs=[
            pl.BlockSpec((L, block_b, K1), lambda i: (0, i, 0)),    # im2col'd input
            _resident(w1f.shape), _resident(b1.shape),
            _resident(w2.shape), _resident(b2.shape),
            _resident(w3.shape), _resident(b3.shape),
            _resident(fw_scaled.shape), _resident(fb.shape),
        ],
        out_specs=pl.BlockSpec((block_b, F), lambda i: (i, 0)),
        compiler_params=pltpu.CompilerParams(
            dimension_semantics=("parallel",),
            vmem_limit_bytes=40 * 1024 * 1024,               # >16MiB v5e default, <v7x cap
        ),
    )(x1, w1f, b1, w2, b2, w3, b3, fw_scaled, fb)
    return out[:B]


# ----------------------------- parameter setup -------------------------------

def _init_conv(key, co, ci, k):
    kw, kb = jax.random.split(key)
    bound = 1.0 / np.sqrt(ci * k)
    w = jax.random.uniform(kw, (co, ci, k), jnp.float32, -bound, bound)
    b = jax.random.uniform(kb, (co,), jnp.float32, -bound, bound)
    return w, b


def _init_bn(key, c):
    k1, k2, k3, k4 = jax.random.split(key, 4)
    gamma = 1.0 + 0.1 * jax.random.normal(k1, (c,), jnp.float32)
    beta = 0.1 * jax.random.normal(k2, (c,), jnp.float32)
    mean = 0.1 * jax.random.normal(k3, (c,), jnp.float32)
    var = 1.0 + 0.1 * jax.random.uniform(k4, (c,), jnp.float32)
    return gamma, beta, mean, var


def _fold_bn(w, b, gamma, beta, mean, var, eps=1e-5):
    """Fold eval-mode BatchNorm into conv weight/bias; return (K, Ci, Co) layout."""
    scale = gamma / jnp.sqrt(var + eps)                     # (Co,)
    wf = w * scale[:, None, None]                           # (Co, Ci, K)
    bf = (b - mean) * scale + beta                          # (Co,)
    wk = jnp.transpose(wf, (2, 1, 0))                       # -> (K, Ci, Co)
    return wk.astype(jnp.float32), bf.reshape(1, -1).astype(jnp.float32)


def make_params(key, num_classes=10):
    del num_classes  # fc2 / dropout unused in forward()
    ks = jax.random.split(key, 8)
    w1, b1 = _init_conv(ks[0], 32, 1, 5)
    w2, b2 = _init_conv(ks[1], 64, 32, 3)
    w3, b3 = _init_conv(ks[2], 128, 64, 3)
    bn1 = _init_bn(ks[3], 32)
    bn2 = _init_bn(ks[4], 64)
    bn3 = _init_bn(ks[5], 128)
    c1 = _fold_bn(w1, b1, *bn1)
    c2 = _fold_bn(w2, b2, *bn2)
    c3 = _fold_bn(w3, b3, *bn3)
    bound = 1.0 / np.sqrt(128)
    fcw = jax.random.uniform(ks[6], (512, 128), jnp.float32, -bound, bound)
    fcb = jax.random.uniform(ks[7], (512,), jnp.float32, -bound, bound)
    fc = (jnp.transpose(fcw), fcb.reshape(1, -1))           # (128, 512), (1, 512)
    return (c1, c2, c3, fc)


# ----------------------------- pure-JAX reference ----------------------------

def _ref_forward(x_ncl, params):
    (w1, b1), (w2, b2), (w3, b3), (fw, fb) = params

    def conv_same(x, w, b):                                 # x: (B, L, Ci)
        K = w.shape[0]
        pad = (K - 1) // 2
        L = x.shape[1]
        xp = jnp.pad(x, ((0, 0), (pad, pad), (0, 0)))
        acc = sum(jnp.einsum('blc,cd->bld', xp[:, k:k + L, :], w[k])
                  for k in range(K))
        return acc + b

    x = jnp.transpose(x_ncl, (0, 2, 1)).astype(jnp.float32)
    h = jnp.maximum(conv_same(x, w1, b1), 0.0)
    h = jnp.maximum(conv_same(h, w2, b2), 0.0)
    h = jnp.maximum(conv_same(h, w3, b3), 0.0)
    pooled = jnp.mean(h, axis=1)                            # (B, 128)
    feat = pooled @ fw + fb
    n = jnp.maximum(jnp.sqrt(jnp.sum(feat * feat, axis=1, keepdims=True)), 1e-12)
    return feat / n


if __name__ == "__main__":
    key = jax.random.PRNGKey(0)
    kx, kp = jax.random.split(key)
    params = make_params(kp, num_classes=10)

    # small test: single block
    B, L = 2, 16
    x = jax.random.normal(kx, (B, 1, L), jnp.float32)       # PyTorch NCL input
    out = jax.block_until_ready(model_1_feature_forward(x, params))
    ref = jax.block_until_ready(_ref_forward(x, params))
    assert out.shape == (B, 512)
    assert np.allclose(np.asarray(out), np.asarray(ref), rtol=1e-3, atol=1e-3), (
        "Pallas kernel mismatch vs reference (single block)")

    # second test: exercises batch padding + multi-block parallel grid
    B2 = 40
    x2 = jax.random.normal(jax.random.PRNGKey(1), (B2, 1, L), jnp.float32)
    out2 = jax.block_until_ready(model_1_feature_forward(x2, params, block_b=16))
    ref2 = jax.block_until_ready(_ref_forward(x2, params))
    assert out2.shape == (B2, 512)
    assert np.allclose(np.asarray(out2), np.asarray(ref2), rtol=1e-3, atol=1e-3), (
        "Pallas kernel mismatch vs reference (multi block)")

    print("KERNEL_OK")
</pallas_src>

<mosaic_0001>
module attributes {stable_mosaic.version = 11 : i64} {
  func.func @_feature_kernel(%arg0: i32, %arg1: memref<16x8x5xf32, #tpu.memory_space<vmem>>, %arg2: memref<5x32xf32, #tpu.memory_space<vmem>>, %arg3: memref<1x32xf32, #tpu.memory_space<vmem>>, %arg4: memref<3x32x64xf32, #tpu.memory_space<vmem>>, %arg5: memref<1x64xf32, #tpu.memory_space<vmem>>, %arg6: memref<3x64x128xf32, #tpu.memory_space<vmem>>, %arg7: memref<1x128xf32, #tpu.memory_space<vmem>>, %arg8: memref<128x512xf32, #tpu.memory_space<vmem>>, %arg9: memref<1x512xf32, #tpu.memory_space<vmem>>, %arg10: memref<8x512xf32, #tpu.memory_space<vmem>>) attributes {dimension_semantics = [#tpu.dimension_semantics<parallel>], iteration_bounds = array<i64: 1>, scalar_prefetch = 0 : i64, scratch_operands = 0 : i64, tpu.core_type = #tpu.core_type<tc>, window_params = [{transform_indices = @transform_0, window_bounds = array<i64: 16, 8, 5>}, {pipeline_mode = #tpu.pipeline_mode<synchronous>, transform_indices = @transform_1, window_bounds = array<i64: 5, 32>}, {pipeline_mode = #tpu.pipeline_mode<synchronous>, transform_indices = @transform_2, window_bounds = array<i64: 1, 32>}, {pipeline_mode = #tpu.pipeline_mode<synchronous>, transform_indices = @transform_3, window_bounds = array<i64: 3, 32, 64>}, {pipeline_mode = #tpu.pipeline_mode<synchronous>, transform_indices = @transform_4, window_bounds = array<i64: 1, 64>}, {pipeline_mode = #tpu.pipeline_mode<synchronous>, transform_indices = @transform_5, window_bounds = array<i64: 3, 64, 128>}, {pipeline_mode = #tpu.pipeline_mode<synchronous>, transform_indices = @transform_6, window_bounds = array<i64: 1, 128>}, {pipeline_mode = #tpu.pipeline_mode<synchronous>, transform_indices = @transform_7, window_bounds = array<i64: 128, 512>}, {pipeline_mode = #tpu.pipeline_mode<synchronous>, transform_indices = @transform_8, window_bounds = array<i64: 1, 512>}, {transform_indices = @transform_9, window_bounds = array<i64: 8, 512>}]} {
    %c0 = arith.constant 0 : index
    %c0_0 = arith.constant 0 : index
    %c0_1 = arith.constant 0 : index
    %0 = vector.load %arg1[%c0, %c0_0, %c0_1] : memref<16x8x5xf32, #tpu.memory_space<vmem>>, vector<16x8x5xf32>
    %1 = vector.shape_cast %0 : vector<16x8x5xf32> to vector<128x5xf32>
    %c0_2 = arith.constant 0 : index
    %c0_3 = arith.constant 0 : index
    %2 = vector.load %arg2[%c0_2, %c0_3] : memref<5x32xf32, #tpu.memory_space<vmem>>, vector<5x32xf32>
    %cst = arith.constant dense<0.000000e+00> : vector<128x32xf32>
    %3 = tpu.matmul %1, %2, %cst {dimension_numbers = #tpu.dot_dimension_numbers<[1], [0], [0], [1], [0, 0, 1, 1], [], []>} : vector<128x5xf32>, vector<5x32xf32>, vector<128x32xf32> -> vector<128x32xf32>
    %c0_4 = arith.constant 0 : index
    %c0_5 = arith.constant 0 : index
    %4 = vector.load %arg3[%c0_4, %c0_5] : memref<1x32xf32, #tpu.memory_space<vmem>>, vector<1x32xf32>
    %5 = vector.broadcast %4 : vector<1x32xf32> to vector<128x32xf32>
    %6 = arith.addf %3, %5 : vector<128x32xf32>
    %cst_6 = arith.constant 0.000000e+00 : f32
    %7 = vector.broadcast %cst_6 : f32 to vector<128x32xf32>
    %8 = arith.maximumf %6, %7 : vector<128x32xf32>
    %9 = vector.shape_cast %8 : vector<128x32xf32> to vector<16x8x32xf32>
    %10 = vector.shape_cast %9 : vector<16x8x32xf32> to vector<128x32xf32>
    %c1 = arith.constant 1 : index
    %c0_7 = arith.constant 0 : index
    %c0_8 = arith.constant 0 : index
    %11 = vector.load %arg4[%c1, %c0_7, %c0_8] : memref<3x32x64xf32, #tpu.memory_space<vmem>>, vector<1x32x64xf32>
    %12 = vector.shape_cast %11 : vector<1x32x64xf32> to vector<32x64xf32>
    %cst_9 = arith.constant dense<0.000000e+00> : vector<128x64xf32>
    %13 = tpu.matmul %10, %12, %cst_9 {dimension_numbers = #tpu.dot_dimension_numbers<[1], [0], [0], [1], [0, 0, 1, 1], [], []>} : vector<128x32xf32>, vector<32x64xf32>, vector<128x64xf32> -> vector<128x64xf32>
    %14 = vector.shape_cast %13 : vector<128x64xf32> to vector<16x8x64xf32>
    %c0_10 = arith.constant 0 : index
    %c0_11 = arith.constant 0 : index
    %15 = vector.load %arg5[%c0_10, %c0_11] : memref<1x64xf32, #tpu.memory_space<vmem>>, vector<1x64xf32>
    %16 = vector.shape_cast %15 : vector<1x64xf32> to vector<1x1x64xf32>
    %17 = vector.broadcast %16 : vector<1x1x64xf32> to vector<16x8x64xf32>
    %18 = arith.addf %14, %17 : vector<16x8x64xf32>
    %19 = vector.extract_strided_slice %9 {offsets = [0, 0, 0], sizes = [15, 8, 32], strides = [1, 1, 1]} : vector<16x8x32xf32> to vector<15x8x32xf32>
    %20 = vector.shape_cast %19 : vector<15x8x32xf32> to vector<120x32xf32>
    %c0_12 = arith.constant 0 : index
    %c0_13 = arith.constant 0 : index
    %c0_14 = arith.constant 0 : index
    %21 = vector.load %arg4[%c0_12, %c0_13, %c0_14] : memref<3x32x64xf32, #tpu.memory_space<vmem>>, vector<1x32x64xf32>
    %22 = vector.shape_cast %21 : vector<1x32x64xf32> to vector<32x64xf32>
    %cst_15 = arith.constant dense<0.000000e+00> : vector<120x64xf32>
    %23 = tpu.matmul %20, %22, %cst_15 {dimension_numbers = #tpu.dot_dimension_numbers<[1], [0], [0], [1], [0, 0, 1, 1], [], []>} : vector<120x32xf32>, vector<32x64xf32>, vector<120x64xf32> -> vector<120x64xf32>
    %24 = vector.shape_cast %23 : vector<120x64xf32> to vector<15x8x64xf32>
    %25 = vector.extract_strided_slice %9 {offsets = [1, 0, 0], sizes = [15, 8, 32], strides = [1, 1, 1]} : vector<16x8x32xf32> to vector<15x8x32xf32>
    %26 = vector.shape_cast %25 : vector<15x8x32xf32> to vector<120x32xf32>
    %c2 = arith.constant 2 : index
    %c0_16 = arith.constant 0 : index
    %c0_17 = arith.constant 0 : index
    %27 = vector.load %arg4[%c2, %c0_16, %c0_17] : memref<3x32x64xf32, #tpu.memory_space<vmem>>, vector<1x32x64xf32>
    %28 = vector.shape_cast %27 : vector<1x32x64xf32> to vector<32x64xf32>
    %cst_18 = arith.constant dense<0.000000e+00> : vector<120x64xf32>
    %29 = tpu.matmul %26, %28, %cst_18 {dimension_numbers = #tpu.dot_dimension_numbers<[1], [0], [0], [1], [0, 0, 1, 1], [], []>} : vector<120x32xf32>, vector<32x64xf32>, vector<120x64xf32> -> vector<120x64xf32>
    %30 = vector.shape_cast %29 : vector<120x64xf32> to vector<15x8x64xf32>
    %cst_19 = arith.constant 0.000000e+00 : f32
    %31 = vector.broadcast %cst_19 : f32 to vector<1x8x64xf32>
    %32 = tpu.concatenate %31, %24 in 0 : vector<1x8x64xf32>, vector<15x8x64xf32> -> vector<16x8x64xf32>
    %33 = arith.addf %18, %32 : vector<16x8x64xf32>
    %34 = tpu.concatenate %30, %31 in 0 : vector<15x8x64xf32>, vector<1x8x64xf32> -> vector<16x8x64xf32>
    %35 = arith.addf %33, %34 : vector<16x8x64xf32>
    %cst_20 = arith.constant 0.000000e+00 : f32
    %36 = vector.broadcast %cst_20 : f32 to vector<16x8x64xf32>
    %37 = arith.maximumf %35, %36 : vector<16x8x64xf32>
    %38 = vector.shape_cast %37 : vector<16x8x64xf32> to vector<128x64xf32>
    %c1_21 = arith.constant 1 : index
    %c0_22 = arith.constant 0 : index
    %c0_23 = arith.constant 0 : index
    %39 = vector.load %arg6[%c1_21, %c0_22, %c0_23] : memref<3x64x128xf32, #tpu.memory_space<vmem>>, vector<1x64x128xf32>
    %40 = vector.shape_cast %39 : vector<1x64x128xf32> to vector<64x128xf32>
    %cst_24 = arith.constant dense<0.000000e+00> : vector<128x128xf32>
    %41 = tpu.matmul %38, %40, %cst_24 {dimension_numbers = #tpu.dot_dimension_numbers<[1], [0], [0], [1], [0, 0, 1, 1], [], []>} : vector<128x64xf32>, vector<64x128xf32>, vector<128x128xf32> -> vector<128x128xf32>
    %42 = vector.shape_cast %41 : vector<128x128xf32> to vector<16x8x128xf32>
    %c0_25 = arith.constant 0 : index
    %c0_26 = arith.constant 0 : index
    %43 = vector.load %arg7[%c0_25, %c0_26] : memref<1x128xf32, #tpu.memory_space<vmem>>, vector<1x128xf32>
    %44 = vector.shape_cast %43 : vector<1x128xf32> to vector<1x1x128xf32>
    %45 = vector.broadcast %44 : vector<1x1x128xf32> to vector<16x8x128xf32>
    %46 = arith.addf %42, %45 : vector<16x8x128xf32>
    %47 = vector.extract_strided_slice %37 {offsets = [0, 0, 0], sizes = [15, 8, 64], strides = [1, 1, 1]} : vector<16x8x64xf32> to vector<15x8x64xf32>
    %48 = vector.shape_cast %47 : vector<15x8x64xf32> to vector<120x64xf32>
    %c0_27 = arith.constant 0 : index
    %c0_28 = arith.constant 0 : index
    %c0_29 = arith.constant 0 : index
    %49 = vector.load %arg6[%c0_27, %c0_28, %c0_29] : memref<3x64x128xf32, #tpu.memory_space<vmem>>, vector<1x64x128xf32>
    %50 = vector.shape_cast %49 : vector<1x64x128xf32> to vector<64x128xf32>
    %cst_30 = arith.constant dense<0.000000e+00> : vector<120x128xf32>
    %51 = tpu.matmul %48, %50, %cst_30 {dimension_numbers = #tpu.dot_dimension_numbers<[1], [0], [0], [1], [0, 0, 1, 1], [], []>} : vector<120x64xf32>, vector<64x128xf32>, vector<120x128xf32> -> vector<120x128xf32>
    %52 = vector.shape_cast %51 : vector<120x128xf32> to vector<15x8x128xf32>
    %53 = vector.extract_strided_slice %37 {offsets = [1, 0, 0], sizes = [15, 8, 64], strides = [1, 1, 1]} : vector<16x8x64xf32> to vector<15x8x64xf32>
    %54 = vector.shape_cast %53 : vector<15x8x64xf32> to vector<120x64xf32>
    %c2_31 = arith.constant 2 : index
    %c0_32 = arith.constant 0 : index
    %c0_33 = arith.constant 0 : index
    %55 = vector.load %arg6[%c2_31, %c0_32, %c0_33] : memref<3x64x128xf32, #tpu.memory_space<vmem>>, vector<1x64x128xf32>
    %56 = vector.shape_cast %55 : vector<1x64x128xf32> to vector<64x128xf32>
    %cst_34 = arith.constant dense<0.000000e+00> : vector<120x128xf32>
    %57 = tpu.matmul %54, %56, %cst_34 {dimension_numbers = #tpu.dot_dimension_numbers<[1], [0], [0], [1], [0, 0, 1, 1], [], []>} : vector<120x64xf32>, vector<64x128xf32>, vector<120x128xf32> -> vector<120x128xf32>
    %58 = vector.shape_cast %57 : vector<120x128xf32> to vector<15x8x128xf32>
    %cst_35 = arith.constant 0.000000e+00 : f32
    %59 = vector.broadcast %cst_35 : f32 to vector<1x8x128xf32>
    %60 = tpu.concatenate %59, %52 in 0 : vector<1x8x128xf32>, vector<15x8x128xf32> -> vector<16x8x128xf32>
    %61 = arith.addf %46, %60 : vector<16x8x128xf32>
    %62 = tpu.concatenate %58, %59 in 0 : vector<15x8x128xf32>, vector<1x8x128xf32> -> vector<16x8x128xf32>
    %63 = arith.addf %61, %62 : vector<16x8x128xf32>
    %cst_36 = arith.constant 0.000000e+00 : f32
    %64 = vector.broadcast %cst_36 : f32 to vector<16x8x128xf32>
    %65 = arith.maximumf %63, %64 : vector<16x8x128xf32>
    %cst_37 = arith.constant dense<0.000000e+00> : vector<8x128xf32>
    %66 = vector.multi_reduction <add>, %65, %cst_37 [0] : vector<16x8x128xf32> to vector<8x128xf32>
    %c0_38 = arith.constant 0 : index
    %c0_39 = arith.constant 0 : index
    %67 = vector.load %arg8[%c0_38, %c0_39] : memref<128x512xf32, #tpu.memory_space<vmem>>, vector<128x512xf32>
    %cst_40 = arith.constant dense<0.000000e+00> : vector<8x512xf32>
    %68 = tpu.matmul %66, %67, %cst_40 {dimension_numbers = #tpu.dot_dimension_numbers<[1], [0], [0], [1], [0, 0, 1, 1], [], []>} : vector<8x128xf32>, vector<128x512xf32>, vector<8x512xf32> -> vector<8x512xf32>
    %c0_41 = arith.constant 0 : index
    %c0_42 = arith.constant 0 : index
    %69 = vector.load %arg9[%c0_41, %c0_42] : memref<1x512xf32, #tpu.memory_space<vmem>>, vector<1x512xf32>
    %70 = vector.broadcast %69 : vector<1x512xf32> to vector<8x512xf32>
    %71 = arith.addf %68, %70 : vector<8x512xf32>
    %72 = arith.mulf %71, %71 : vector<8x512xf32>
    %cst_43 = arith.constant dense<0.000000e+00> : vector<8xf32>
    %73 = vector.multi_reduction <add>, %72, %cst_43 [1] : vector<8x512xf32> to vector<8xf32>
    %74 = vector.shape_cast %73 : vector<8xf32> to vector<8x1xf32>
    %cst_44 = arith.constant 1.000000e-24 : f32
    %75 = vector.broadcast %cst_44 : f32 to vector<8x1xf32>
    %76 = arith.maximumf %74, %75 : vector<8x1xf32>
    %77 = math.rsqrt %76 : vector<8x1xf32>
    %78 = vector.broadcast %77 : vector<8x1xf32> to vector<8x512xf32>
    %79 = arith.mulf %71, %78 : vector<8x512xf32>
    %c0_45 = arith.constant 0 : index
    %c0_46 = arith.constant 0 : index
    %80 = vector.load %arg10[%c0_45, %c0_46] : memref<8x512xf32, #tpu.memory_space<vmem>>, vector<8x512xf32>
    tpu.vector_store %arg10[%c0_45, %c0_46], %79 {strides = array<i32>} : memref<8x512xf32, #tpu.memory_space<vmem>>, vector<8x512xf32>,
    return
  }
  func.func @transform_0(%arg0: i32) -> (i32, i32, i32) {
    %c0_i32 = arith.constant 0 : i32
    %c0_i32_0 = arith.constant 0 : i32
    %c0_i32_1 = arith.constant 0 : i32
    return %c0_i32, %arg0, %c0_i32_0 : i32, i32, i32
  }
  func.func @transform_1(%arg0: i32) -> (i32, i32) {
    %c0_i32 = arith.constant 0 : i32
    %c0_i32_0 = arith.constant 0 : i32
    %c0_i32_1 = arith.constant 0 : i32
    return %c0_i32, %c0_i32_0 : i32, i32
  }
  func.func @transform_2(%arg0: i32) -> (i32, i32) {
    %c0_i32 = arith.constant 0 : i32
    %c0_i32_0 = arith.constant 0 : i32
    %c0_i32_1 = arith.constant 0 : i32
    return %c0_i32, %c0_i32_0 : i32, i32
  }
  func.func @transform_3(%arg0: i32) -> (i32, i32, i32) {
    %c0_i32 = arith.constant 0 : i32
    %c0_i32_0 = arith.constant 0 : i32
    %c0_i32_1 = arith.constant 0 : i32
    %c0_i32_2 = arith.constant 0 : i32
    return %c0_i32, %c0_i32_0, %c0_i32_1 : i32, i32, i32
  }
  func.func @transform_4(%arg0: i32) -> (i32, i32) {
    %c0_i32 = arith.constant 0 : i32
    %c0_i32_0 = arith.constant 0 : i32
    %c0_i32_1 = arith.constant 0 : i32
    return %c0_i32, %c0_i32_0 : i32, i32
  }
  func.func @transform_5(%arg0: i32) -> (i32, i32, i32) {
    %c0_i32 = arith.constant 0 : i32
    %c0_i32_0 = arith.constant 0 : i32
    %c0_i32_1 = arith.constant 0 : i32
    %c0_i32_2 = arith.constant 0 : i32
    return %c0_i32, %c0_i32_0, %c0_i32_1 : i32, i32, i32
  }
  func.func @transform_6(%arg0: i32) -> (i32, i32) {
    %c0_i32 = arith.constant 0 : i32
    %c0_i32_0 = arith.constant 0 : i32
    %c0_i32_1 = arith.constant 0 : i32
    return %c0_i32, %c0_i32_0 : i32, i32
  }
  func.func @transform_7(%arg0: i32) -> (i32, i32) {
    %c0_i32 = arith.constant 0 : i32
    %c0_i32_0 = arith.constant 0 : i32
    %c0_i32_1 = arith.constant 0 : i32
    return %c0_i32, %c0_i32_0 : i32, i32
  }
  func.func @transform_8(%arg0: i32) -> (i32, i32) {
    %c0_i32 = arith.constant 0 : i32
    %c0_i32_0 = arith.constant 0 : i32
    %c0_i32_1 = arith.constant 0 : i32
    return %c0_i32, %c0_i32_0 : i32, i32
  }
  func.func @transform_9(%arg0: i32) -> (i32, i32) {
    %c0_i32 = arith.constant 0 : i32
    %c0_i32_0 = arith.constant 0 : i32
    return %arg0, %c0_i32 : i32, i32
  }
}

</mosaic_0001>

<llo_original>
// kernel: tpu_custom_call.1
$region0: #{tpu_custom_call.1}
  #allocation0 [shape = 'u32[]', space=smem, size = 0x4, offset = 0x4, fixed_abs, tag = 'smem constant byte address 0x4 - core index']
  #allocation1 [shape = 'u32[144,128]{1,0:T(1,128)}', space=vmem, size = 0x12000, scoped, tag = 'internal scratch']
  %s0 = inlined_call_operand.vmem [shape: f32[16,8,5], index: 0, kind: input, shape index: {}]
  %s1 = inlined_call_operand.vmem [shape: f32[5,32], index: 1, kind: input, shape index: {}]
  %s2 = inlined_call_operand.vmem [shape: f32[1,32], index: 2, kind: input, shape index: {}]
  %s3 = inlined_call_operand.vmem [shape: f32[3,32,64], index: 3, kind: input, shape index: {}]
  %s4 = inlined_call_operand.vmem [shape: f32[1,64], index: 4, kind: input, shape index: {}]
  %s5 = inlined_call_operand.hbm [shape: f32[3,64,128], index: 5, kind: input, shape index: {}]
  %s6 = inlined_call_operand.vmem [shape: f32[1,128], index: 6, kind: input, shape index: {}]
  %s7 = inlined_call_operand.hbm [shape: f32[128,512], index: 7, kind: input, shape index: {}]
  %s8 = inlined_call_operand.vmem [shape: f32[1,512], index: 8, kind: input, shape index: {}]
  %s9 = inlined_call_operand.hbm [shape: f32[8,512], index: 9, kind: output, shape index: {}]
  %s10 = sld [smem:[#allocation0]]
  $region54: #{tpu_custom_call.1} parent=0
    _
  %s12 = ssub.s32 1, %s10
  %s13 = scalar_select 0, %s12, %s10
  $region1: #{tpu_custom_call.1} parent=0
    #allocation2 [shape = 'u8[98304]{0}', space=vmem, size = 0x18000, scoped, tag = 'input window, operand 5, single buffered']
    #allocation3 [shape = 's32[1]{0}', space=sflag, size = 0x4, scoped, tag = 'scoped memory for tpu_custom_call.1']
    #allocation4 [shape = 's32[1]{0}', space=sflag, size = 0x4, scoped, tag = 'scoped memory for tpu_custom_call.1']
    #allocation5 [shape = 'u8[262144]{0}', space=vmem, size = 0x40000, scoped, tag = 'input window, operand 7, single buffered']
    #allocation6 [shape = 's32[1]{0}', space=sflag, size = 0x4, scoped, tag = 'scoped memory for tpu_custom_call.1']
    #allocation7 [shape = 'u8[16384]{0}', space=vmem, size = 0x4000, scoped, tag = 'output window, operand 0, single buffered']
    %14 = vsyncpa [#allocation3], 0
    %15 = vsyncpa [#allocation6], 0
    %16 = vsyncpa [#allocation4], 0
    // Predicated region
    $region2: #{tpu_custom_call.1} parent=1 // pred_check
      _
    $region3: #{tpu_custom_call.1} parent=1 // pred_check_branch
      %18 = sbr.rel (0) target = $region5
    $region4: #{tpu_custom_call.1} parent=1 // pred_region
      _
    $region5: #{tpu_custom_call.1} parent=1 // pred_fallthru
      _
    // Predicated region
    $region6: #{tpu_custom_call.1} parent=1 // pred_check
      _
    $region7: #{tpu_custom_call.1} parent=1 // pred_check_branch
      %20 = sbr.rel (0) target = $region9
    $region8: #{tpu_custom_call.1} parent=1 // pred_region
      _
    $region9: #{tpu_custom_call.1} parent=1 // pred_fallthru
      _
    // Predicated region
    $region10: #{tpu_custom_call.1} parent=1 // pred_check
      _
    $region11: #{tpu_custom_call.1} parent=1 // pred_check_branch
      %22 = sbr.rel (0) target = $region13
    $region12: #{tpu_custom_call.1} parent=1 // pred_region
      _
    $region13: #{tpu_custom_call.1} parent=1 // pred_fallthru
      _
    // Predicated region
    $region14: #{tpu_custom_call.1} parent=1 // pred_check
      _
    $region15: #{tpu_custom_call.1} parent=1 // pred_check_branch
      %24 = sbr.rel (0) target = $region17
    $region16: #{tpu_custom_call.1} parent=1 // pred_region
      _
    $region17: #{tpu_custom_call.1} parent=1 // pred_fallthru
      _
    // Predicated region
    $region18: #{tpu_custom_call.1} parent=1 // pred_check
      _
    $region19: #{tpu_custom_call.1} parent=1 // pred_check_branch
      %26 = sbr.rel (0) target = $region21
    $region20: #{tpu_custom_call.1} parent=1 // pred_region
      _
    $region21: #{tpu_custom_call.1} parent=1 // pred_fallthru
      _
    // Predicated region
    $region22: #{tpu_custom_call.1} parent=1 // pred_check
      _
    $region23: #{tpu_custom_call.1} parent=1 // pred_check_branch
      %28 = sbr.rel (0) target = $region25
    $region24: #{tpu_custom_call.1} parent=1 // pred_region
      %s30 = ssub.s32 3072, 3072
      %31 = vsyncadd [#allocation3], %s30
      %s32 = sshll.u32 [#allocation2], 4
      %s33 = int_to_ptr.vmem [resolvable:$true] %s32
      %38 = dma.hbm_to_vmem [thread:$0]  %s5, 3072, %s33, [#allocation3], 128, 128, 8
    $region25: #{tpu_custom_call.1} parent=1 // pred_fallthru
      _
    // Predicated region
    $region26: #{tpu_custom_call.1} parent=1 // pred_check
      _
    $region27: #{tpu_custom_call.1} parent=1 // pred_check_branch
      %40 = sbr.rel (0) target = $region29
    $region28: #{tpu_custom_call.1} parent=1 // pred_region
      _
    $region29: #{tpu_custom_call.1} parent=1 // pred_fallthru
      _
    // Predicated region
    $region30: #{tpu_custom_call.1} parent=1 // pred_check
      _
    $region31: #{tpu_custom_call.1} parent=1 // pred_check_branch
      %42 = sbr.rel (0) target = $region33
    $region32: #{tpu_custom_call.1} parent=1 // pred_region
      %s44 = ssub.s32 8192, 8192
      %45 = vsyncadd [#allocation6], %s44
      %s46 = sshll.u32 [#allocation5], 4
      %s47 = int_to_ptr.vmem [resolvable:$true] %s46
      %52 = dma.hbm_to_vmem [thread:$0]  %s7, 8192, %s47, [#allocation6], 512, 512, 32
    $region33: #{tpu_custom_call.1} parent=1 // pred_fallthru
      _
    // Predicated region
    $region34: #{tpu_custom_call.1} parent=1 // pred_check
      _
    $region35: #{tpu_custom_call.1} parent=1 // pred_check_branch
      %54 = sbr.rel (0) target = $region37
    $region36: #{tpu_custom_call.1} parent=1 // pred_region
      _
    $region37: #{tpu_custom_call.1} parent=1 // pred_fallthru
      _
    // Predicated region
    $region38: #{tpu_custom_call.1} parent=1 // pred_check
      _
    $region39: #{tpu_custom_call.1} parent=1 // pred_check_branch
      %56 = sbr.rel (0) target = $region41
    $region40: #{tpu_custom_call.1} parent=1 // pred_region
      %57 = dma.done [#allocation3], 3072
    $region41: #{tpu_custom_call.1} parent=1 // pred_fallthru
      _
    // Predicated region
    $region42: #{tpu_custom_call.1} parent=1 // pred_check
      _
    $region43: #{tpu_custom_call.1} parent=1 // pred_check_branch
      %59 = sbr.rel (0) target = $region45
    $region44: #{tpu_custom_call.1} parent=1 // pred_region
      %60 = dma.done [#allocation6], 8192
    $region45: #{tpu_custom_call.1} parent=1 // pred_fallthru
      _
    %v61 = vld [vmem:[%s0] sm:$0xff]
    %v62 = vld [vmem:[%s0 + $0x8] sm:$0xff]
    %v63 = vld [vmem:[%s0 + $0x10] sm:$0xff]
    %v64 = vld [vmem:[%s0 + $0x18] sm:$0xff]
    %v65 = vld [vmem:[%s0 + $0x20] sm:$0xff]
    %v66 = vld [vmem:[%s0 + $0x28] sm:$0xff]
    %v67 = vld [vmem:[%s0 + $0x30] sm:$0xff]
    %v68 = vld [vmem:[%s0 + $0x38] sm:$0xff]
    %v69 = vld [vmem:[%s0 + $0x40] sm:$0xff]
    %v70 = vld [vmem:[%s0 + $0x48] sm:$0xff]
    %v71 = vld [vmem:[%s0 + $0x50] sm:$0xff]
    %v72 = vld [vmem:[%s0 + $0x58] sm:$0xff]
    %v73 = vld [vmem:[%s0 + $0x60] sm:$0xff]
    %v74 = vld [vmem:[%s0 + $0x68] sm:$0xff]
    %v75 = vld [vmem:[%s0 + $0x70] sm:$0xff]
    %v76 = vld [vmem:[%s0 + $0x78] sm:$0xff]
    %v77 = vld [vmem:[%s1] sm:$0x1f]
    %v78 = vld [vmem:[%s2] sm:$0x1]
    %v80 = vlaneseq
    %v81 = vshrl.u32 %v80, 7
    %v82 = vsub.s32 0, %v81
    %v83 = vrot.slane %v78, %v82
    %vm85 = vcmask 39936
    %v87 = vsel %vm85, %v61, 0
    %v90 = vsel %vm85, %v62, 0
    %v93 = vsel %vm85, %v63, 0
    %v96 = vsel %vm85, %v64, 0
    %v99 = vsel %vm85, %v65, 0
    %v102 = vsel %vm85, %v66, 0
    %v105 = vsel %vm85, %v67, 0
    %v108 = vsel %vm85, %v68, 0
    %v111 = vsel %vm85, %v69, 0
    %v114 = vsel %vm85, %v70, 0
    %v117 = vsel %vm85, %v71, 0
    %v120 = vsel %vm85, %v72, 0
    %v123 = vsel %vm85, %v73, 0
    %v126 = vsel %vm85, %v74, 0
    %v129 = vsel %vm85, %v75, 0
    %v132 = vsel %vm85, %v76, 0
    %vm134 = vcmask 1044480
    %v136 = vsel %vm134, %v77, 0
    %138 = vmatprep.subr.mxu0 0.0
    %139 = vmatpush1.msra.mxu0 0.0
    %140 = vmatprep.subr.mxu0 0.0
    %141 = vmatpush1.msra.mxu0 0.0
    %142 = vmatprep.subr.mxu0 0.0
    %143 = vmatpush1.msra.mxu0 0.0
    %144 = vmatprep.subr.mxu0 0.0
    %145 = vmatpush1.msra.mxu0 0.0
    %146 = vmatprep.subr.mxu0 0.0
    %147 = vmatpush1.msra.mxu0 0.0
    %148 = vmatprep.subr.mxu0 0.0
    %149 = vmatpush1.msra.mxu0 0.0
    %150 = vmatprep.subr.mxu0 0.0
    %151 = vmatpush1.msra.mxu0 0.0
    %152 = vmatprep.subr.mxu0 0.0
    %153 = vmatpush1.msra.mxu0 0.0
    %154 = vmatprep.subr.mxu0 0.0
    %155 = vmatpush1.msra.mxu0 0.0
    %156 = vmatprep.subr.mxu0 0.0
    %157 = vmatpush1.msra.mxu0 0.0
    %158 = vmatprep.subr.mxu0 0.0
    %159 = vmatpush1.msra.mxu0 0.0
    %160 = vmatprep.subr.mxu0 0.0
    %161 = vmatpush1.msra.mxu0 0.0
    %162 = vmatprep.subr.mxu0 0.0
    %163 = vmatpush1.msra.mxu0 0.0
    %164 = vmatprep.subr.mxu0 0.0
    %165 = vmatpush1.msra.mxu0 0.0
    %166 = vmatprep.subr.mxu0 0.0
    %167 = vmatpush1.msra.mxu0 0.0
    %168 = vmatprep.subr.mxu0 0.0
    %169 = vmatpush1.msra.mxu0 %v136
    %170 = vmatprep.subr.mxu0 0.0
    %171 = vmatpush2.msra.mxu0 0.0
    %172 = vmatprep.subr.mxu0 0.0
    %173 = vmatpush2.msra.mxu0 0.0
    %174 = vmatprep.subr.mxu0 0.0
    %175 = vmatpush2.msra.mxu0 0.0
    %176 = vmatprep.subr.mxu0 0.0
    %177 = vmatpush2.msra.mxu0 0.0
    %178 = vmatprep.subr.mxu0 0.0
    %179 = vmatpush2.msra.mxu0 0.0
    %180 = vmatprep.subr.mxu0 0.0
    %181 = vmatpush2.msra.mxu0 0.0
    %182 = vmatprep.subr.mxu0 0.0
    %183 = vmatpush2.msra.mxu0 0.0
    %184 = vmatprep.subr.mxu0 0.0
    %185 = vmatpush2.msra.mxu0 0.0
    %186 = vmatprep.subr.mxu0 0.0
    %187 = vmatpush2.msra.mxu0 0.0
    %188 = vmatprep.subr.mxu0 0.0
    %189 = vmatpush2.msra.mxu0 0.0
    %190 = vmatprep.subr.mxu0 0.0
    %191 = vmatpush2.msra.mxu0 0.0
    %192 = vmatprep.subr.mxu0 0.0
    %193 = vmatpush2.msra.mxu0 0.0
    %194 = vmatprep.subr.mxu0 0.0
    %195 = vmatpush2.msra.mxu0 0.0
    %196 = vmatprep.subr.mxu0 0.0
    %197 = vmatpush2.msra.mxu0 0.0
    %198 = vmatprep.subr.mxu0 0.0
    %199 = vmatpush2.msra.mxu0 0.0
    %200 = vmatprep.subr.mxu0 0.0
    %201 = vmatpush2.msra.mxu0 0.0
    %202 = vmatprep.mubr.f32.mxu0 0.0
    %203 = vmatmul.mubr.f32.gmra.mxu0 %v87
    %v204 = vpop.f32.mrf.mxu0
    %v205 = vadd.f32 %v83, %v204
    %v206 = vpop.f32.mrf.mxu0
    %207 = vmatprep.mubr.f32.mxu0 0.0
    %208 = vmatmul.mubr.f32.gmra.mxu0 %v90
    %v209 = vpop.f32.mrf.mxu0
    %v210 = vadd.f32 %v83, %v209
    %v211 = vpop.f32.mrf.mxu0
    %212 = vmatprep.mubr.f32.mxu0 0.0
    %213 = vmatmul.mubr.f32.gmra.mxu0 %v93
    %v214 = vpop.f32.mrf.mxu0
    %v215 = vadd.f32 %v83, %v214
    %v216 = vpop.f32.mrf.mxu0
    %217 = vmatprep.mubr.f32.mxu0 0.0
    %218 = vmatmul.mubr.f32.gmra.mxu0 %v96
    %v219 = vpop.f32.mrf.mxu0
    %v220 = vadd.f32 %v83, %v219
    %v221 = vpop.f32.mrf.mxu0
    %222 = vmatprep.mubr.f32.mxu0 0.0
    %223 = vmatmul.mubr.f32.gmra.mxu0 %v99
    %v224 = vpop.f32.mrf.mxu0
    %v225 = vadd.f32 %v83, %v224
    %v226 = vpop.f32.mrf.mxu0
    %227 = vmatprep.mubr.f32.mxu0 0.0
    %228 = vmatmul.mubr.f32.gmra.mxu0 %v102
    %v229 = vpop.f32.mrf.mxu0
    %v230 = vadd.f32 %v83, %v229
    %v231 = vpop.f32.mrf.mxu0
    %232 = vmatprep.mubr.f32.mxu0 0.0
    %233 = vmatmul.mubr.f32.gmra.mxu0 %v105
    %v234 = vpop.f32.mrf.mxu0
    %v235 = vadd.f32 %v83, %v234
    %v236 = vpop.f32.mrf.mxu0
    %237 = vmatprep.mubr.f32.mxu0 0.0
    %238 = vmatmul.mubr.f32.gmra.mxu0 %v108
    %v239 = vpop.f32.mrf.mxu0
    %v240 = vadd.f32 %v83, %v239
    %v241 = vpop.f32.mrf.mxu0
    %242 = vmatprep.mubr.f32.mxu0 0.0
    %243 = vmatmul.mubr.f32.gmra.mxu0 %v111
    %v244 = vpop.f32.mrf.mxu0
    %v245 = vadd.f32 %v83, %v244
    %v246 = vpop.f32.mrf.mxu0
    %247 = vmatprep.mubr.f32.mxu0 0.0
    %248 = vmatmul.mubr.f32.gmra.mxu0 %v114
    %v249 = vpop.f32.mrf.mxu0
    %v250 = vadd.f32 %v83, %v249
    %v251 = vpop.f32.mrf.mxu0
    %252 = vmatprep.mubr.f32.mxu0 0.0
    %253 = vmatmul.mubr.f32.gmra.mxu0 %v117
    %v254 = vpop.f32.mrf.mxu0
    %v255 = vadd.f32 %v83, %v254
    %v256 = vpop.f32.mrf.mxu0
    %257 = vmatprep.mubr.f32.mxu0 0.0
    %258 = vmatmul.mubr.f32.gmra.mxu0 %v120
    %v259 = vpop.f32.mrf.mxu0
    %v260 = vadd.f32 %v83, %v259
    %v261 = vpop.f32.mrf.mxu0
    %262 = vmatprep.mubr.f32.mxu0 0.0
    %263 = vmatmul.mubr.f32.gmra.mxu0 %v123
    %v264 = vpop.f32.mrf.mxu0
    %v265 = vadd.f32 %v83, %v264
    %v266 = vpop.f32.mrf.mxu0
    %267 = vmatprep.mubr.f32.mxu0 0.0
    %268 = vmatmul.mubr.f32.gmra.mxu0 %v126
    %v269 = vpop.f32.mrf.mxu0
    %v270 = vadd.f32 %v83, %v269
    %v271 = vpop.f32.mrf.mxu0
    %272 = vmatprep.mubr.f32.mxu0 0.0
    %273 = vmatmul.mubr.f32.gmra.mxu0 %v129
    %v274 = vpop.f32.mrf.mxu0
    %v275 = vadd.f32 %v83, %v274
    %v276 = vpop.f32.mrf.mxu0
    %277 = vmatprep.mubr.f32.mxu0 0.0
    %278 = vmatmul.mubr.f32.gmra.mxu0 %v132
    %v279 = vpop.f32.mrf.mxu0
    %v280 = vadd.f32 %v83, %v279
    %v281 = vpop.f32.mrf.mxu0
    %282 = vdwg.mxu0
    %v283 = vmax.f32 %v205, 0.0
    %v284 = vmax.f32 %v210, 0.0
    %v285 = vmax.f32 %v215, 0.0
    %v286 = vmax.f32 %v220, 0.0
    %v287 = vmax.f32 %v225, 0.0
    %v288 = vmax.f32 %v230, 0.0
    %v289 = vmax.f32 %v235, 0.0
    %v290 = vmax.f32 %v240, 0.0
    %v291 = vmax.f32 %v245, 0.0
    %v292 = vmax.f32 %v250, 0.0
    %v293 = vmax.f32 %v255, 0.0
    %v294 = vmax.f32 %v260, 0.0
    %v295 = vmax.f32 %v265, 0.0
    %v296 = vmax.f32 %v270, 0.0
    %v297 = vmax.f32 %v275, 0.0
    %v298 = vmax.f32 %v280, 0.0
    %s299 = scalar_lea.vmem %s3, 32
    %v300 = vld [vmem:[%s299] sm:$0xff]
    %v301 = vld [vmem:[%s299 + $0x8] sm:$0xff]
    %v302 = vld [vmem:[%s299 + $0x10] sm:$0xff]
    %v303 = vld [vmem:[%s299 + $0x18] sm:$0xff]
    %vm304 = vcmask 261120
    %v306 = vsel %vm304, %v283, 0
    %v309 = vsel %vm304, %v284, 0
    %v312 = vsel %vm304, %v285, 0
    %v315 = vsel %vm304, %v286, 0
    %v318 = vsel %vm304, %v287, 0
    %v321 = vsel %vm304, %v288, 0
    %v324 = vsel %vm304, %v289, 0
    %v327 = vsel %vm304, %v290, 0
    %v330 = vsel %vm304, %v291, 0
    %v333 = vsel %vm304, %v292, 0
    %v336 = vsel %vm304, %v293, 0
    %v339 = vsel %vm304, %v294, 0
    %v342 = vsel %vm304, %v295, 0
    %v345 = vsel %vm304, %v296, 0
    %v348 = vsel %vm304, %v297, 0
    %v351 = vsel %vm304, %v298, 0
    %353 = vmatprep.subr.mxu0 0.0
    %354 = vmatpush1.msra.mxu0 0.0
    %355 = vmatprep.subr.mxu0 0.0
    %356 = vmatpush1.msra.mxu0 0.0
    %357 = vmatprep.subr.mxu0 0.0
    %358 = vmatpush1.msra.mxu0 0.0
    %359 = vmatprep.subr.mxu0 0.0
    %360 = vmatpush1.msra.mxu0 0.0
    %361 = vmatprep.subr.mxu0 0.0
    %362 = vmatpush1.msra.mxu0 0.0
    %363 = vmatprep.subr.mxu0 0.0
    %364 = vmatpush1.msra.mxu0 0.0
    %365 = vmatprep.subr.mxu0 0.0
    %366 = vmatpush1.msra.mxu0 0.0
    %367 = vmatprep.subr.mxu0 0.0
    %368 = vmatpush1.msra.mxu0 0.0
    %369 = vmatprep.subr.mxu0 0.0
    %370 = vmatpush1.msra.mxu0 0.0
    %371 = vmatprep.subr.mxu0 0.0
    %372 = vmatpush1.msra.mxu0 0.0
    %373 = vmatprep.subr.mxu0 0.0
    %374 = vmatpush1.msra.mxu0 0.0
    %375 = vmatprep.subr.mxu0 0.0
    %376 = vmatpush1.msra.mxu0 0.0
    %377 = vmatprep.subr.mxu0 0.0
    %378 = vmatpush1.msra.mxu0 %v303
    %379 = vmatprep.subr.mxu0 0.0
    %380 = vmatpush1.msra.mxu0 %v302
    %381 = vmatprep.subr.mxu0 0.0
    %382 = vmatpush1.msra.mxu0 %v301
    %383 = vmatprep.subr.mxu0 0.0
    %384 = vmatpush1.msra.mxu0 %v300
    %385 = vmatprep.subr.mxu0 0.0
    %386 = vmatpush2.msra.mxu0 0.0
    %387 = vmatprep.subr.mxu0 0.0
    %388 = vmatpush2.msra.mxu0 0.0
    %389 = vmatprep.subr.mxu0 0.0
    %390 = vmatpush2.msra.mxu0 0.0
    %391 = vmatprep.subr.mxu0 0.0
    %392 = vmatpush2.msra.mxu0 0.0
    %393 = vmatprep.subr.mxu0 0.0
    %394 = vmatpush2.msra.mxu0 0.0
    %395 = vmatprep.subr.mxu0 0.0
    %396 = vmatpush2.msra.mxu0 0.0
    %397 = vmatprep.subr.mxu0 0.0
    %398 = vmatpush2.msra.mxu0 0.0
    %399 = vmatprep.subr.mxu0 0.0
    %400 = vmatpush2.msra.mxu0 0.0
    %401 = vmatprep.subr.mxu0 0.0
    %402 = vmatpush2.msra.mxu0 0.0
    %403 = vmatprep.subr.mxu0 0.0
    %404 = vmatpush2.msra.mxu0 0.0
    %405 = vmatprep.subr.mxu0 0.0
    %406 = vmatpush2.msra.mxu0 0.0
    %407 = vmatprep.subr.mxu0 0.0
    %408 = vmatpush2.msra.mxu0 0.0
    %409 = vmatprep.subr.mxu0 0.0
    %410 = vmatpush2.msra.mxu0 0.0
    %411 = vmatprep.subr.mxu0 0.0
    %412 = vmatpush2.msra.mxu0 0.0
    %413 = vmatprep.subr.mxu0 0.0
    %414 = vmatpush2.msra.mxu0 0.0
    %415 = vmatprep.subr.mxu0 0.0
    %416 = vmatpush2.msra.mxu0 0.0
    %417 = vmatprep.mubr.f32.mxu0 0.0
    %418 = vmatmul.mubr.f32.gmra.mxu0 %v306
    %v419 = vpop.f32.mrf.mxu0
    %v420 = vadd.f32 0.0, %v419
    %v421 = vpop.f32.mrf.mxu0
    %422 = vmatprep.mubr.f32.mxu0 0.0
    %423 = vmatmul.mubr.f32.gmra.mxu0 %v309
    %v424 = vpop.f32.mrf.mxu0
    %v425 = vadd.f32 0.0, %v424
    %v426 = vpop.f32.mrf.mxu0
    %427 = vmatprep.mubr.f32.mxu0 0.0
    %428 = vmatmul.mubr.f32.gmra.mxu0 %v312
    %v429 = vpop.f32.mrf.mxu0
    %v430 = vadd.f32 0.0, %v429
    %v431 = vpop.f32.mrf.mxu0
    %432 = vmatprep.mubr.f32.mxu0 0.0
    %433 = vmatmul.mubr.f32.gmra.mxu0 %v315
    %v434 = vpop.f32.mrf.mxu0
    %v435 = vadd.f32 0.0, %v434
    %v436 = vpop.f32.mrf.mxu0
    %437 = vmatprep.mubr.f32.mxu0 0.0
    %438 = vmatmul.mubr.f32.gmra.mxu0 %v318
    %v439 = vpop.f32.mrf.mxu0
    %v440 = vadd.f32 0.0, %v439
    %v441 = vpop.f32.mrf.mxu0
    %442 = vmatprep.mubr.f32.mxu0 0.0
    %443 = vmatmul.mubr.f32.gmra.mxu0 %v321
    %v444 = vpop.f32.mrf.mxu0
    %v445 = vadd.f32 0.0, %v444
    %v446 = vpop.f32.mrf.mxu0
    %447 = vmatprep.mubr.f32.mxu0 0.0
    %448 = vmatmul.mubr.f32.gmra.mxu0 %v324
    %v449 = vpop.f32.mrf.mxu0
    %v450 = vadd.f32 0.0, %v449
    %v451 = vpop.f32.mrf.mxu0
    %452 = vmatprep.mubr.f32.mxu0 0.0
    %453 = vmatmul.mubr.f32.gmra.mxu0 %v327
    %v454 = vpop.f32.mrf.mxu0
    %v455 = vadd.f32 0.0, %v454
    %v456 = vpop.f32.mrf.mxu0
    %457 = vmatprep.mubr.f32.mxu0 0.0
    %458 = vmatmul.mubr.f32.gmra.mxu0 %v330
    %v459 = vpop.f32.mrf.mxu0
    %v460 = vadd.f32 0.0, %v459
    %v461 = vpop.f32.mrf.mxu0
    %462 = vmatprep.mubr.f32.mxu0 0.0
    %463 = vmatmul.mubr.f32.gmra.mxu0 %v333
    %v464 = vpop.f32.mrf.mxu0
    %v465 = vadd.f32 0.0, %v464
    %v466 = vpop.f32.mrf.mxu0
    %467 = vmatprep.mubr.f32.mxu0 0.0
    %468 = vmatmul.mubr.f32.gmra.mxu0 %v336
    %v469 = vpop.f32.mrf.mxu0
    %v470 = vadd.f32 0.0, %v469
    %v471 = vpop.f32.mrf.mxu0
    %472 = vmatprep.mubr.f32.mxu0 0.0
    %473 = vmatmul.mubr.f32.gmra.mxu0 %v339
    %v474 = vpop.f32.mrf.mxu0
    %v475 = vadd.f32 0.0, %v474
    %v476 = vpop.f32.mrf.mxu0
    %477 = vmatprep.mubr.f32.mxu0 0.0
    %478 = vmatmul.mubr.f32.gmra.mxu0 %v342
    %v479 = vpop.f32.mrf.mxu0
    %v480 = vadd.f32 0.0, %v479
    %v481 = vpop.f32.mrf.mxu0
    %482 = vmatprep.mubr.f32.mxu0 0.0
    %483 = vmatmul.mubr.f32.gmra.mxu0 %v345
    %v484 = vpop.f32.mrf.mxu0
    %v485 = vadd.f32 0.0, %v484
    %v486 = vpop.f32.mrf.mxu0
    %487 = vmatprep.mubr.f32.mxu0 0.0
    %488 = vmatmul.mubr.f32.gmra.mxu0 %v348
    %v489 = vpop.f32.mrf.mxu0
    %v490 = vadd.f32 0.0, %v489
    %v491 = vpop.f32.mrf.mxu0
    %492 = vmatprep.mubr.f32.mxu0 0.0
    %493 = vmatmul.mubr.f32.gmra.mxu0 %v351
    %v494 = vpop.f32.mrf.mxu0
    %v495 = vadd.f32 0.0, %v494
    %v496 = vpop.f32.mrf.mxu0
    %497 = vdwg.mxu0
    %v498 = vld [vmem:[%s4] sm:$0x1]
    %v500 = vlaneseq
    %v501 = vshrl.u32 %v500, 7
    %v502 = vsub.s32 0, %v501
    %v503 = vrot.slane %v498, %v502
    %v505 = vadd.f32 %v420, %v503
    %v506 = vadd.f32 %v425, %v503
    %v507 = vadd.f32 %v430, %v503
    %v508 = vadd.f32 %v435, %v503
    %v509 = vadd.f32 %v440, %v503
    %v510 = vadd.f32 %v445, %v503
    %v511 = vadd.f32 %v450, %v503
    %v512 = vadd.f32 %v455, %v503
    %v513 = vadd.f32 %v460, %v503
    %v514 = vadd.f32 %v465, %v503
    %v515 = vadd.f32 %v470, %v503
    %v516 = vadd.f32 %v475, %v503
    %v517 = vadd.f32 %v480, %v503
    %v518 = vadd.f32 %v485, %v503
    %v519 = vadd.f32 %v490, %v503
    %v520 = vadd.f32 %v495, %v503
    %v521 = vld [vmem:[%s3] sm:$0xff]
    %v522 = vld [vmem:[%s3 + $0x8] sm:$0xff]
    %v523 = vld [vmem:[%s3 + $0x10] sm:$0xff]
    %v524 = vld [vmem:[%s3 + $0x18] sm:$0xff]
    %525 = vmatprep.subr.mxu0 0.0
    %526 = vmatpush1.msra.mxu0 0.0
    %527 = vmatprep.subr.mxu0 0.0
    %528 = vmatpush1.msra.mxu0 0.0
    %529 = vmatprep.subr.mxu0 0.0
    %530 = vmatpush1.msra.mxu0 0.0
    %531 = vmatprep.subr.mxu0 0.0
    %532 = vmatpush1.msra.mxu0 0.0
    %533 = vmatprep.subr.mxu0 0.0
    %534 = vmatpush1.msra.mxu0 0.0
    %535 = vmatprep.subr.mxu0 0.0
    %536 = vmatpush1.msra.mxu0 0.0
    %537 = vmatprep.subr.mxu0 0.0
    %538 = vmatpush1.msra.mxu0 0.0
    %539 = vmatprep.subr.mxu0 0.0
    %540 = vmatpush1.msra.mxu0 0.0
    %541 = vmatprep.subr.mxu0 0.0
    %542 = vmatpush1.msra.mxu0 0.0
    %543 = vmatprep.subr.mxu0 0.0
    %544 = vmatpush1.msra.mxu0 0.0
    %545 = vmatprep.subr.mxu0 0.0
    %546 = vmatpush1.msra.mxu0 0.0
    %547 = vmatprep.subr.mxu0 0.0
    %548 = vmatpush1.msra.mxu0 0.0
    %549 = vmatprep.subr.mxu0 0.0
    %550 = vmatpush1.msra.mxu0 %v524
    %551 = vmatprep.subr.mxu0 0.0
    %552 = vmatpush1.msra.mxu0 %v523
    %553 = vmatprep.subr.mxu0 0.0
    %554 = vmatpush1.msra.mxu0 %v522
    %555 = vmatprep.subr.mxu0 0.0
    %556 = vmatpush1.msra.mxu0 %v521
    %557 = vmatprep.subr.mxu0 0.0
    %558 = vmatpush2.msra.mxu0 0.0
    %559 = vmatprep.subr.mxu0 0.0
    %560 = vmatpush2.msra.mxu0 0.0
    %561 = vmatprep.subr.mxu0 0.0
    %562 = vmatpush2.msra.mxu0 0.0
    %563 = vmatprep.subr.mxu0 0.0
    %564 = vmatpush2.msra.mxu0 0.0
    %565 = vmatprep.subr.mxu0 0.0
    %566 = vmatpush2.msra.mxu0 0.0
    %567 = vmatprep.subr.mxu0 0.0
    %568 = vmatpush2.msra.mxu0 0.0
    %569 = vmatprep.subr.mxu0 0.0
    %570 = vmatpush2.msra.mxu0 0.0
    %571 = vmatprep.subr.mxu0 0.0
    %572 = vmatpush2.msra.mxu0 0.0
    %573 = vmatprep.subr.mxu0 0.0
    %574 = vmatpush2.msra.mxu0 0.0
    %575 = vmatprep.subr.mxu0 0.0
    %576 = vmatpush2.msra.mxu0 0.0
    %577 = vmatprep.subr.mxu0 0.0
    %578 = vmatpush2.msra.mxu0 0.0
    %579 = vmatprep.subr.mxu0 0.0
    %580 = vmatpush2.msra.mxu0 0.0
    %581 = vmatprep.subr.mxu0 0.0
    %582 = vmatpush2.msra.mxu0 0.0
    %583 = vmatprep.subr.mxu0 0.0
    %584 = vmatpush2.msra.mxu0 0.0
    %585 = vmatprep.subr.mxu0 0.0
    %586 = vmatpush2.msra.mxu0 0.0
    %587 = vmatprep.subr.mxu0 0.0
    %588 = vmatpush2.msra.mxu0 0.0
    %589 = vmatprep.mubr.f32.mxu0 0.0
    %590 = vmatmul.mubr.f32.gmra.mxu0 %v306
    %v591 = vpop.f32.mrf.mxu0
    %v592 = vadd.f32 0.0, %v591
    %v593 = vpop.f32.mrf.mxu0
    %594 = vmatprep.mubr.f32.mxu0 0.0
    %595 = vmatmul.mubr.f32.gmra.mxu0 %v309
    %v596 = vpop.f32.mrf.mxu0
    %v597 = vadd.f32 0.0, %v596
    %v598 = vpop.f32.mrf.mxu0
    %599 = vmatprep.mubr.f32.mxu0 0.0
    %600 = vmatmul.mubr.f32.gmra.mxu0 %v312
    %v601 = vpop.f32.mrf.mxu0
    %v602 = vadd.f32 0.0, %v601
    %v603 = vpop.f32.mrf.mxu0
    %604 = vmatprep.mubr.f32.mxu0 0.0
    %605 = vmatmul.mubr.f32.gmra.mxu0 %v315
    %v606 = vpop.f32.mrf.mxu0
    %v607 = vadd.f32 0.0, %v606
    %v608 = vpop.f32.mrf.mxu0
    %609 = vmatprep.mubr.f32.mxu0 0.0
    %610 = vmatmul.mubr.f32.gmra.mxu0 %v318
    %v611 = vpop.f32.mrf.mxu0
    %v612 = vadd.f32 0.0, %v611
    %v613 = vpop.f32.mrf.mxu0
    %614 = vmatprep.mubr.f32.mxu0 0.0
    %615 = vmatmul.mubr.f32.gmra.mxu0 %v321
    %v616 = vpop.f32.mrf.mxu0
    %v617 = vadd.f32 0.0, %v616
    %v618 = vpop.f32.mrf.mxu0
    %619 = vmatprep.mubr.f32.mxu0 0.0
    %620 = vmatmul.mubr.f32.gmra.mxu0 %v324
    %v621 = vpop.f32.mrf.mxu0
    %v622 = vadd.f32 0.0, %v621
    %v623 = vpop.f32.mrf.mxu0
    %624 = vmatprep.mubr.f32.mxu0 0.0
    %625 = vmatmul.mubr.f32.gmra.mxu0 %v327
    %v626 = vpop.f32.mrf.mxu0
    %v627 = vadd.f32 0.0, %v626
    %v628 = vpop.f32.mrf.mxu0
    %629 = vmatprep.mubr.f32.mxu0 0.0
    %630 = vmatmul.mubr.f32.gmra.mxu0 %v330
    %v631 = vpop.f32.mrf.mxu0
    %v632 = vadd.f32 0.0, %v631
    %v633 = vpop.f32.mrf.mxu0
    %634 = vmatprep.mubr.f32.mxu0 0.0
    %635 = vmatmul.mubr.f32.gmra.mxu0 %v333
    %v636 = vpop.f32.mrf.mxu0
    %v637 = vadd.f32 0.0, %v636
    %v638 = vpop.f32.mrf.mxu0
    %639 = vmatprep.mubr.f32.mxu0 0.0
    %640 = vmatmul.mubr.f32.gmra.mxu0 %v336
    %v641 = vpop.f32.mrf.mxu0
    %v642 = vadd.f32 0.0, %v641
    %v643 = vpop.f32.mrf.mxu0
    %644 = vmatprep.mubr.f32.mxu0 0.0
    %645 = vmatmul.mubr.f32.gmra.mxu0 %v339
    %v646 = vpop.f32.mrf.mxu0
    %v647 = vadd.f32 0.0, %v646
    %v648 = vpop.f32.mrf.mxu0
    %649 = vmatprep.mubr.f32.mxu0 0.0
    %650 = vmatmul.mubr.f32.gmra.mxu0 %v342
    %v651 = vpop.f32.mrf.mxu0
    %v652 = vadd.f32 0.0, %v651
    %v653 = vpop.f32.mrf.mxu0
    %654 = vmatprep.mubr.f32.mxu0 0.0
    %655 = vmatmul.mubr.f32.gmra.mxu0 %v345
    %v656 = vpop.f32.mrf.mxu0
    %v657 = vadd.f32 0.0, %v656
    %v658 = vpop.f32.mrf.mxu0
    %659 = vmatprep.mubr.f32.mxu0 0.0
    %660 = vmatmul.mubr.f32.gmra.mxu0 %v348
    %v661 = vpop.f32.mrf.mxu0
    %v662 = vadd.f32 0.0, %v661
    %v663 = vpop.f32.mrf.mxu0
    %664 = vdwg.mxu0
    %s665 = scalar_lea.vmem %s3, 64
    %v666 = vld [vmem:[%s665] sm:$0xff]
    %v667 = vld [vmem:[%s665 + $0x8] sm:$0xff]
    %v668 = vld [vmem:[%s665 + $0x10] sm:$0xff]
    %v669 = vld [vmem:[%s665 + $0x18] sm:$0xff]
    %670 = vmatprep.subr.mxu0 0.0
    %671 = vmatpush1.msra.mxu0 0.0
    %672 = vmatprep.subr.mxu0 0.0
    %673 = vmatpush1.msra.mxu0 0.0
    %674 = vmatprep.subr.mxu0 0.0
    %675 = vmatpush1.msra.mxu0 0.0
    %676 = vmatprep.subr.mxu0 0.0
    %677 = vmatpush1.msra.mxu0 0.0
    %678 = vmatprep.subr.mxu0 0.0
    %679 = vmatpush1.msra.mxu0 0.0
    %680 = vmatprep.subr.mxu0 0.0
    %681 = vmatpush1.msra.mxu0 0.0
    %682 = vmatprep.subr.mxu0 0.0
    %683 = vmatpush1.msra.mxu0 0.0
    %684 = vmatprep.subr.mxu0 0.0
    %685 = vmatpush1.msra.mxu0 0.0
    %686 = vmatprep.subr.mxu0 0.0
    %687 = vmatpush1.msra.mxu0 0.0
    %688 = vmatprep.subr.mxu0 0.0
    %689 = vmatpush1.msra.mxu0 0.0
    %690 = vmatprep.subr.mxu0 0.0
    %691 = vmatpush1.msra.mxu0 0.0
    %692 = vmatprep.subr.mxu0 0.0
    %693 = vmatpush1.msra.mxu0 0.0
    %694 = vmatprep.subr.mxu0 0.0
    %695 = vmatpush1.msra.mxu0 %v669
    %696 = vmatprep.subr.mxu0 0.0
    %697 = vmatpush1.msra.mxu0 %v668
    %698 = vmatprep.subr.mxu0 0.0
    %699 = vmatpush1.msra.mxu0 %v667
    %700 = vmatprep.subr.mxu0 0.0
    %701 = vmatpush1.msra.mxu0 %v666
    %702 = vmatprep.subr.mxu0 0.0
    %703 = vmatpush2.msra.mxu0 0.0
    %704 = vmatprep.subr.mxu0 0.0
    %705 = vmatpush2.msra.mxu0 0.0
    %706 = vmatprep.subr.mxu0 0.0
    %707 = vmatpush2.msra.mxu0 0.0
    %708 = vmatprep.subr.mxu0 0.0
    %709 = vmatpush2.msra.mxu0 0.0
    %710 = vmatprep.subr.mxu0 0.0
    %711 = vmatpush2.msra.mxu0 0.0
    %712 = vmatprep.subr.mxu0 0.0
    %713 = vmatpush2.msra.mxu0 0.0
    %714 = vmatprep.subr.mxu0 0.0
    %715 = vmatpush2.msra.mxu0 0.0
    %716 = vmatprep.subr.mxu0 0.0
    %717 = vmatpush2.msra.mxu0 0.0
    %718 = vmatprep.subr.mxu0 0.0
    %719 = vmatpush2.msra.mxu0 0.0
    %720 = vmatprep.subr.mxu0 0.0
    %721 = vmatpush2.msra.mxu0 0.0
    %722 = vmatprep.subr.mxu0 0.0
    %723 = vmatpush2.msra.mxu0 0.0
    %724 = vmatprep.subr.mxu0 0.0
    %725 = vmatpush2.msra.mxu0 0.0
    %726 = vmatprep.subr.mxu0 0.0
    %727 = vmatpush2.msra.mxu0 0.0
    %728 = vmatprep.subr.mxu0 0.0
    %729 = vmatpush2.msra.mxu0 0.0
    %730 = vmatprep.subr.mxu0 0.0
    %731 = vmatpush2.msra.mxu0 0.0
    %732 = vmatprep.subr.mxu0 0.0
    %733 = vmatpush2.msra.mxu0 0.0
    %734 = vmatprep.mubr.f32.mxu0 0.0
    %735 = vmatmul.mubr.f32.gmra.mxu0 %v309
    %v736 = vpop.f32.mrf.mxu0
    %v737 = vadd.f32 0.0, %v736
    %v738 = vpop.f32.mrf.mxu0
    %739 = vmatprep.mubr.f32.mxu0 0.0
    %740 = vmatmul.mubr.f32.gmra.mxu0 %v312
    %v741 = vpop.f32.mrf.mxu0
    %v742 = vadd.f32 0.0, %v741
    %v743 = vpop.f32.mrf.mxu0
    %744 = vmatprep.mubr.f32.mxu0 0.0
    %745 = vmatmul.mubr.f32.gmra.mxu0 %v315
    %v746 = vpop.f32.mrf.mxu0
    %v747 = vadd.f32 0.0, %v746
    %v748 = vpop.f32.mrf.mxu0
    %749 = vmatprep.mubr.f32.mxu0 0.0
    %750 = vmatmul.mubr.f32.gmra.mxu0 %v318
    %v751 = vpop.f32.mrf.mxu0
    %v752 = vadd.f32 0.0, %v751
    %v753 = vpop.f32.mrf.mxu0
    %754 = vmatprep.mubr.f32.mxu0 0.0
    %755 = vmatmul.mubr.f32.gmra.mxu0 %v321
    %v756 = vpop.f32.mrf.mxu0
    %v757 = vadd.f32 0.0, %v756
    %v758 = vpop.f32.mrf.mxu0
    %759 = vmatprep.mubr.f32.mxu0 0.0
    %760 = vmatmul.mubr.f32.gmra.mxu0 %v324
    %v761 = vpop.f32.mrf.mxu0
    %v762 = vadd.f32 0.0, %v761
    %v763 = vpop.f32.mrf.mxu0
    %764 = vmatprep.mubr.f32.mxu0 0.0
    %765 = vmatmul.mubr.f32.gmra.mxu0 %v327
    %v766 = vpop.f32.mrf.mxu0
    %v767 = vadd.f32 0.0, %v766
    %v768 = vpop.f32.mrf.mxu0
    %769 = vmatprep.mubr.f32.mxu0 0.0
    %770 = vmatmul.mubr.f32.gmra.mxu0 %v330
    %v771 = vpop.f32.mrf.mxu0
    %v772 = vadd.f32 0.0, %v771
    %v773 = vpop.f32.mrf.mxu0
    %774 = vmatprep.mubr.f32.mxu0 0.0
    %775 = vmatmul.mubr.f32.gmra.mxu0 %v333
    %v776 = vpop.f32.mrf.mxu0
    %v777 = vadd.f32 0.0, %v776
    %v778 = vpop.f32.mrf.mxu0
    %779 = vmatprep.mubr.f32.mxu0 0.0
    %780 = vmatmul.mubr.f32.gmra.mxu0 %v336
    %v781 = vpop.f32.mrf.mxu0
    %v782 = vadd.f32 0.0, %v781
    %v783 = vpop.f32.mrf.mxu0
    %784 = vmatprep.mubr.f32.mxu0 0.0
    %785 = vmatmul.mubr.f32.gmra.mxu0 %v339
    %v786 = vpop.f32.mrf.mxu0
    %v787 = vadd.f32 0.0, %v786
    %v788 = vpop.f32.mrf.mxu0
    %789 = vmatprep.mubr.f32.mxu0 0.0
    %790 = vmatmul.mubr.f32.gmra.mxu0 %v342
    %v791 = vpop.f32.mrf.mxu0
    %v792 = vadd.f32 0.0, %v791
    %v793 = vpop.f32.mrf.mxu0
    %794 = vmatprep.mubr.f32.mxu0 0.0
    %795 = vmatmul.mubr.f32.gmra.mxu0 %v345
    %v796 = vpop.f32.mrf.mxu0
    %v797 = vadd.f32 0.0, %v796
    %v798 = vpop.f32.mrf.mxu0
    %799 = vmatprep.mubr.f32.mxu0 0.0
    %800 = vmatmul.mubr.f32.gmra.mxu0 %v348
    %v801 = vpop.f32.mrf.mxu0
    %v802 = vadd.f32 0.0, %v801
    %v803 = vpop.f32.mrf.mxu0
    %804 = vmatprep.mubr.f32.mxu0 0.0
    %805 = vmatmul.mubr.f32.gmra.mxu0 %v351
    %v806 = vpop.f32.mrf.mxu0
    %v807 = vadd.f32 0.0, %v806
    %v808 = vpop.f32.mrf.mxu0
    %809 = vdwg.mxu0
    %v810 = vadd.f32 %v505, 0.0
    %v811 = vadd.f32 %v506, %v592
    %v812 = vadd.f32 %v507, %v597
    %v813 = vadd.f32 %v508, %v602
    %v814 = vadd.f32 %v509, %v607
    %v815 = vadd.f32 %v510, %v612
    %v816 = vadd.f32 %v511, %v617
    %v817 = vadd.f32 %v512, %v622
    %v818 = vadd.f32 %v513, %v627
    %v819 = vadd.f32 %v514, %v632
    %v820 = vadd.f32 %v515, %v637
    %v821 = vadd.f32 %v516, %v642
    %v822 = vadd.f32 %v517, %v647
    %v823 = vadd.f32 %v518, %v652
    %v824 = vadd.f32 %v519, %v657
    %v825 = vadd.f32 %v520, %v662
    %v826 = vadd.f32 %v810, %v737
    %v827 = vadd.f32 %v811, %v742
    %v828 = vadd.f32 %v812, %v747
    %v829 = vadd.f32 %v813, %v752
    %v830 = vadd.f32 %v814, %v757
    %v831 = vadd.f32 %v815, %v762
    %v832 = vadd.f32 %v816, %v767
    %v833 = vadd.f32 %v817, %v772
    %v834 = vadd.f32 %v818, %v777
    %v835 = vadd.f32 %v819, %v782
    %v836 = vadd.f32 %v820, %v787
    %v837 = vadd.f32 %v821, %v792
    %v838 = vadd.f32 %v822, %v797
    %v839 = vadd.f32 %v823, %v802
    %v840 = vadd.f32 %v824, %v807
    %v841 = vadd.f32 %v825, 0.0
    %v842 = vmax.f32 %v826, 0.0
    %v843 = vmax.f32 %v827, 0.0
    %v844 = vmax.f32 %v828, 0.0
    %v845 = vmax.f32 %v829, 0.0
    %v846 = vmax.f32 %v830, 0.0
    %v847 = vmax.f32 %v831, 0.0
    %v848 = vmax.f32 %v832, 0.0
    %v849 = vmax.f32 %v833, 0.0
    %v850 = vmax.f32 %v834, 0.0
    %v851 = vmax.f32 %v835, 0.0
    %v852 = vmax.f32 %v836, 0.0
    %v853 = vmax.f32 %v837, 0.0
    %v854 = vmax.f32 %v838, 0.0
    %v855 = vmax.f32 %v839, 0.0
    %v856 = vmax.f32 %v840, 0.0
    %v857 = vmax.f32 %v841, 0.0
    %s858 = scalar_lea.vmem [#allocation2], 64
    %v859 = vld [vmem:[%s858] sm:$0xff]
    %v860 = vld [vmem:[%s858 + $0x8] sm:$0xff]
    %v861 = vld [vmem:[%s858 + $0x10] sm:$0xff]
    %v862 = vld [vmem:[%s858 + $0x18] sm:$0xff]
    %v863 = vld [vmem:[%s858 + $0x20] sm:$0xff]
    %v864 = vld [vmem:[%s858 + $0x28] sm:$0xff]
    %v865 = vld [vmem:[%s858 + $0x30] sm:$0xff]
    %v866 = vld [vmem:[%s858 + $0x38] sm:$0xff]
    %vm867 = vcmask 523264
    %v869 = vsel %vm867, %v842, 0
    %v872 = vsel %vm867, %v843, 0
    %v875 = vsel %vm867, %v844, 0
    %v878 = vsel %vm867, %v845, 0
    %v881 = vsel %vm867, %v846, 0
    %v884 = vsel %vm867, %v847, 0
    %v887 = vsel %vm867, %v848, 0
    %v890 = vsel %vm867, %v849, 0
    %v893 = vsel %vm867, %v850, 0
    %v896 = vsel %vm867, %v851, 0
    %v899 = vsel %vm867, %v852, 0
    %v902 = vsel %vm867, %v853, 0
    %v905 = vsel %vm867, %v854, 0
    %v908 = vsel %vm867, %v855, 0
    %v911 = vsel %vm867, %v856, 0
    %v914 = vsel %vm867, %v857, 0
    %916 = vmatprep.subr.mxu0 0.0
    %917 = vmatpush1.msra.mxu0 0.0
    %918 = vmatprep.subr.mxu0 0.0
    %919 = vmatpush1.msra.mxu0 0.0
    %920 = vmatprep.subr.mxu0 0.0
    %921 = vmatpush1.msra.mxu0 0.0
    %922 = vmatprep.subr.mxu0 0.0
    %923 = vmatpush1.msra.mxu0 0.0
    %924 = vmatprep.subr.mxu0 0.0
    %925 = vmatpush1.msra.mxu0 0.0
    %926 = vmatprep.subr.mxu0 0.0
    %927 = vmatpush1.msra.mxu0 0.0
    %928 = vmatprep.subr.mxu0 0.0
    %929 = vmatpush1.msra.mxu0 0.0
    %930 = vmatprep.subr.mxu0 0.0
    %931 = vmatpush1.msra.mxu0 0.0
    %932 = vmatprep.subr.mxu0 0.0
    %933 = vmatpush1.msra.mxu0 %v866
    %934 = vmatprep.subr.mxu0 0.0
    %935 = vmatpush1.msra.mxu0 %v865
    %936 = vmatprep.subr.mxu0 0.0
    %937 = vmatpush1.msra.mxu0 %v864
    %938 = vmatprep.subr.mxu0 0.0
    %939 = vmatpush1.msra.mxu0 %v863
    %940 = vmatprep.subr.mxu0 0.0
    %941 = vmatpush1.msra.mxu0 %v862
    %942 = vmatprep.subr.mxu0 0.0
    %943 = vmatpush1.msra.mxu0 %v861
    %944 = vmatprep.subr.mxu0 0.0
    %945 = vmatpush1.msra.mxu0 %v860
    %946 = vmatprep.subr.mxu0 0.0
    %947 = vmatpush1.msra.mxu0 %v859
    %948 = vmatprep.subr.mxu0 0.0
    %949 = vmatpush2.msra.mxu0 0.0
    %950 = vmatprep.subr.mxu0 0.0
    %951 = vmatpush2.msra.mxu0 0.0
    %952 = vmatprep.subr.mxu0 0.0
    %953 = vmatpush2.msra.mxu0 0.0
    %954 = vmatprep.subr.mxu0 0.0
    %955 = vmatpush2.msra.mxu0 0.0
    %956 = vmatprep.subr.mxu0 0.0
    %957 = vmatpush2.msra.mxu0 0.0
    %958 = vmatprep.subr.mxu0 0.0
    %959 = vmatpush2.msra.mxu0 0.0
    %960 = vmatprep.subr.mxu0 0.0
    %961 = vmatpush2.msra.mxu0 0.0
    %962 = vmatprep.subr.mxu0 0.0
    %963 = vmatpush2.msra.mxu0 0.0
    %964 = vmatprep.subr.mxu0 0.0
    %965 = vmatpush2.msra.mxu0 0.0
    %966 = vmatprep.subr.mxu0 0.0
    %967 = vmatpush2.msra.mxu0 0.0
    %968 = vmatprep.subr.mxu0 0.0
    %969 = vmatpush2.msra.mxu0 0.0
    %970 = vmatprep.subr.mxu0 0.0
    %971 = vmatpush2.msra.mxu0 0.0
    %972 = vmatprep.subr.mxu0 0.0
    %973 = vmatpush2.msra.mxu0 0.0
    %974 = vmatprep.subr.mxu0 0.0
    %975 = vmatpush2.msra.mxu0 0.0
    %976 = vmatprep.subr.mxu0 0.0
    %977 = vmatpush2.msra.mxu0 0.0
    %978 = vmatprep.subr.mxu0 0.0
    %979 = vmatpush2.msra.mxu0 0.0
    %980 = vmatprep.mubr.f32.mxu0 0.0
    %981 = vmatmul.mubr.f32.gmra.mxu0 %v869
    %v982 = vpop.f32.mrf.mxu0
    %v983 = vadd.f32 0.0, %v982
    %v984 = vpop.f32.mrf.mxu0
    %985 = vmatprep.mubr.f32.mxu0 0.0
    %986 = vmatmul.mubr.f32.gmra.mxu0 %v872
    %v987 = vpop.f32.mrf.mxu0
    %v988 = vadd.f32 0.0, %v987
    %v989 = vpop.f32.mrf.mxu0
    %990 = vmatprep.mubr.f32.mxu0 0.0
    %991 = vmatmul.mubr.f32.gmra.mxu0 %v875
    %v992 = vpop.f32.mrf.mxu0
    %v993 = vadd.f32 0.0, %v992
    %v994 = vpop.f32.mrf.mxu0
    %995 = vmatprep.mubr.f32.mxu0 0.0
    %996 = vmatmul.mubr.f32.gmra.mxu0 %v878
    %v997 = vpop.f32.mrf.mxu0
    %v998 = vadd.f32 0.0, %v997
    %v999 = vpop.f32.mrf.mxu0
    %1000 = vmatprep.mubr.f32.mxu0 0.0
    %1001 = vmatmul.mubr.f32.gmra.mxu0 %v881
    %v1002 = vpop.f32.mrf.mxu0
    %v1003 = vadd.f32 0.0, %v1002
    %v1004 = vpop.f32.mrf.mxu0
    %1005 = vmatprep.mubr.f32.mxu0 0.0
    %1006 = vmatmul.mubr.f32.gmra.mxu0 %v884
    %v1007 = vpop.f32.mrf.mxu0
    %v1008 = vadd.f32 0.0, %v1007
    %v1009 = vpop.f32.mrf.mxu0
    %1010 = vmatprep.mubr.f32.mxu0 0.0
    %1011 = vmatmul.mubr.f32.gmra.mxu0 %v887
    %v1012 = vpop.f32.mrf.mxu0
    %v1013 = vadd.f32 0.0, %v1012
    %v1014 = vpop.f32.mrf.mxu0
    %1015 = vmatprep.mubr.f32.mxu0 0.0
    %1016 = vmatmul.mubr.f32.gmra.mxu0 %v890
    %v1017 = vpop.f32.mrf.mxu0
    %v1018 = vadd.f32 0.0, %v1017
    %v1019 = vpop.f32.mrf.mxu0
    %1020 = vmatprep.mubr.f32.mxu0 0.0
    %1021 = vmatmul.mubr.f32.gmra.mxu0 %v893
    %v1022 = vpop.f32.mrf.mxu0
    %v1023 = vadd.f32 0.0, %v1022
    %v1024 = vpop.f32.mrf.mxu0
    %1025 = vmatprep.mubr.f32.mxu0 0.0
    %1026 = vmatmul.mubr.f32.gmra.mxu0 %v896
    %v1027 = vpop.f32.mrf.mxu0
    %v1028 = vadd.f32 0.0, %v1027
    %v1029 = vpop.f32.mrf.mxu0
    %1030 = vmatprep.mubr.f32.mxu0 0.0
    %1031 = vmatmul.mubr.f32.gmra.mxu0 %v899
    %v1032 = vpop.f32.mrf.mxu0
    %v1033 = vadd.f32 0.0, %v1032
    %v1034 = vpop.f32.mrf.mxu0
    %1035 = vmatprep.mubr.f32.mxu0 0.0
    %1036 = vmatmul.mubr.f32.gmra.mxu0 %v902
    %v1037 = vpop.f32.mrf.mxu0
    %v1038 = vadd.f32 0.0, %v1037
    %v1039 = vpop.f32.mrf.mxu0
    %1040 = vmatprep.mubr.f32.mxu0 0.0
    %1041 = vmatmul.mubr.f32.gmra.mxu0 %v905
    %v1042 = vpop.f32.mrf.mxu0
    %v1043 = vadd.f32 0.0, %v1042
    %v1044 = vpop.f32.mrf.mxu0
    %1045 = vmatprep.mubr.f32.mxu0 0.0
    %1046 = vmatmul.mubr.f32.gmra.mxu0 %v908
    %v1047 = vpop.f32.mrf.mxu0
    %v1048 = vadd.f32 0.0, %v1047
    %v1049 = vpop.f32.mrf.mxu0
    %1050 = vmatprep.mubr.f32.mxu0 0.0
    %1051 = vmatmul.mubr.f32.gmra.mxu0 %v911
    %v1052 = vpop.f32.mrf.mxu0
    %v1053 = vadd.f32 0.0, %v1052
    %v1054 = vpop.f32.mrf.mxu0
    %1055 = vmatprep.mubr.f32.mxu0 0.0
    %1056 = vmatmul.mubr.f32.gmra.mxu0 %v914
    %v1057 = vpop.f32.mrf.mxu0
    %v1058 = vadd.f32 0.0, %v1057
    %v1059 = vpop.f32.mrf.mxu0
    %1060 = vdwg.mxu0
    %v1061 = vld [vmem:[%s6] sm:$0x1]
    %v1063 = vlaneseq
    %v1064 = vshrl.u32 %v1063, 7
    %v1065 = vsub.s32 0, %v1064
    %v1066 = vrot.slane %v1061, %v1065
    %v1068 = vadd.f32 %v983, %v1066
    %v1069 = vadd.f32 %v988, %v1066
    %v1070 = vadd.f32 %v993, %v1066
    %v1071 = vadd.f32 %v998, %v1066
    %v1072 = vadd.f32 %v1003, %v1066
    %v1073 = vadd.f32 %v1008, %v1066
    %v1074 = vadd.f32 %v1013, %v1066
    %v1075 = vadd.f32 %v1018, %v1066
    %v1076 = vadd.f32 %v1023, %v1066
    %v1077 = vadd.f32 %v1028, %v1066
    %v1078 = vadd.f32 %v1033, %v1066
    %v1079 = vadd.f32 %v1038, %v1066
    %v1080 = vadd.f32 %v1043, %v1066
    %v1081 = vadd.f32 %v1048, %v1066
    %v1082 = vadd.f32 %v1053, %v1066
    %v1083 = vadd.f32 %v1058, %v1066
    %v1084 = vld [vmem:[#allocation2] sm:$0xff]
    %v1085 = vld [vmem:[#allocation2 + $0x8] sm:$0xff]
    %v1086 = vld [vmem:[#allocation2 + $0x10] sm:$0xff]
    %v1087 = vld [vmem:[#allocation2 + $0x18] sm:$0xff]
    %v1088 = vld [vmem:[#allocation2 + $0x20] sm:$0xff]
    %v1089 = vld [vmem:[#allocation2 + $0x28] sm:$0xff]
    %v1090 = vld [vmem:[#allocation2 + $0x30] sm:$0xff]
    %v1091 = vld [vmem:[#allocation2 + $0x38] sm:$0xff]
    %1092 = vmatprep.subr.mxu0 0.0
    %1093 = vmatpush1.msra.mxu0 0.0
    %1094 = vmatprep.subr.mxu0 0.0
    %1095 = vmatpush1.msra.mxu0 0.0
    %1096 = vmatprep.subr.mxu0 0.0
    %1097 = vmatpush1.msra.mxu0 0.0
    %1098 = vmatprep.subr.mxu0 0.0
    %1099 = vmatpush1.msra.mxu0 0.0
    %1100 = vmatprep.subr.mxu0 0.0
    %1101 = vmatpush1.msra.mxu0 0.0
    %1102 = vmatprep.subr.mxu0 0.0
    %1103 = vmatpush1.msra.mxu0 0.0
    %1104 = vmatprep.subr.mxu0 0.0
    %1105 = vmatpush1.msra.mxu0 0.0
    %1106 = vmatprep.subr.mxu0 0.0
    %1107 = vmatpush1.msra.mxu0 0.0
    %1108 = vmatprep.subr.mxu0 0.0
    %1109 = vmatpush1.msra.mxu0 %v1091
    %1110 = vmatprep.subr.mxu0 0.0
    %1111 = vmatpush1.msra.mxu0 %v1090
    %1112 = vmatprep.subr.mxu0 0.0
    %1113 = vmatpush1.msra.mxu0 %v1089
    %1114 = vmatprep.subr.mxu0 0.0
    %1115 = vmatpush1.msra.mxu0 %v1088
    %1116 = vmatprep.subr.mxu0 0.0
    %1117 = vmatpush1.msra.mxu0 %v1087
    %1118 = vmatprep.subr.mxu0 0.0
    %1119 = vmatpush1.msra.mxu0 %v1086
    %1120 = vmatprep.subr.mxu0 0.0
    %1121 = vmatpush1.msra.mxu0 %v1085
    %1122 = vmatprep.subr.mxu0 0.0
    %1123 = vmatpush1.msra.mxu0 %v1084
    %1124 = vmatprep.subr.mxu0 0.0
    %1125 = vmatpush2.msra.mxu0 0.0
    %1126 = vmatprep.subr.mxu0 0.0
    %1127 = vmatpush2.msra.mxu0 0.0
    %1128 = vmatprep.subr.mxu0 0.0
    %1129 = vmatpush2.msra.mxu0 0.0
    %1130 = vmatprep.subr.mxu0 0.0
    %1131 = vmatpush2.msra.mxu0 0.0
    %1132 = vmatprep.subr.mxu0 0.0
    %1133 = vmatpush2.msra.mxu0 0.0
    %1134 = vmatprep.subr.mxu0 0.0
    %1135 = vmatpush2.msra.mxu0 0.0
    %1136 = vmatprep.subr.mxu0 0.0
    %1137 = vmatpush2.msra.mxu0 0.0
    %1138 = vmatprep.subr.mxu0 0.0
    %1139 = vmatpush2.msra.mxu0 0.0
    %1140 = vmatprep.subr.mxu0 0.0
    %1141 = vmatpush2.msra.mxu0 0.0
    %1142 = vmatprep.subr.mxu0 0.0
    %1143 = vmatpush2.msra.mxu0 0.0
    %1144 = vmatprep.subr.mxu0 0.0
    %1145 = vmatpush2.msra.mxu0 0.0
    %1146 = vmatprep.subr.mxu0 0.0
    %1147 = vmatpush2.msra.mxu0 0.0
    %1148 = vmatprep.subr.mxu0 0.0
    %1149 = vmatpush2.msra.mxu0 0.0
    %1150 = vmatprep.subr.mxu0 0.0
    %1151 = vmatpush2.msra.mxu0 0.0
    %1152 = vmatprep.subr.mxu0 0.0
    %1153 = vmatpush2.msra.mxu0 0.0
    %1154 = vmatprep.subr.mxu0 0.0
    %1155 = vmatpush2.msra.mxu0 0.0
    %1156 = vmatprep.mubr.f32.mxu0 0.0
    %1157 = vmatmul.mubr.f32.gmra.mxu0 %v869
    %v1158 = vpop.f32.mrf.mxu0
    %v1159 = vadd.f32 0.0, %v1158
    %v1160 = vpop.f32.mrf.mxu0
    %1161 = vmatprep.mubr.f32.mxu0 0.0
    %1162 = vmatmul.mubr.f32.gmra.mxu0 %v872
    %v1163 = vpop.f32.mrf.mxu0
    %v1164 = vadd.f32 0.0, %v1163
    %v1165 = vpop.f32.mrf.mxu0
    %1166 = vmatprep.mubr.f32.mxu0 0.0
    %1167 = vmatmul.mubr.f32.gmra.mxu0 %v875
    %v1168 = vpop.f32.mrf.mxu0
    %v1169 = vadd.f32 0.0, %v1168
    %v1170 = vpop.f32.mrf.mxu0
    %1171 = vmatprep.mubr.f32.mxu0 0.0
    %1172 = vmatmul.mubr.f32.gmra.mxu0 %v878
    %v1173 = vpop.f32.mrf.mxu0
    %v1174 = vadd.f32 0.0, %v1173
    %v1175 = vpop.f32.mrf.mxu0
    %1176 = vmatprep.mubr.f32.mxu0 0.0
    %1177 = vmatmul.mubr.f32.gmra.mxu0 %v881
    %v1178 = vpop.f32.mrf.mxu0
    %v1179 = vadd.f32 0.0, %v1178
    %v1180 = vpop.f32.mrf.mxu0
    %1181 = vmatprep.mubr.f32.mxu0 0.0
    %1182 = vmatmul.mubr.f32.gmra.mxu0 %v884
    %v1183 = vpop.f32.mrf.mxu0
    %v1184 = vadd.f32 0.0, %v1183
    %v1185 = vpop.f32.mrf.mxu0
    %1186 = vmatprep.mubr.f32.mxu0 0.0
    %1187 = vmatmul.mubr.f32.gmra.mxu0 %v887
    %v1188 = vpop.f32.mrf.mxu0
    %v1189 = vadd.f32 0.0, %v1188
    %v1190 = vpop.f32.mrf.mxu0
    %1191 = vmatprep.mubr.f32.mxu0 0.0
    %1192 = vmatmul.mubr.f32.gmra.mxu0 %v890
    %v1193 = vpop.f32.mrf.mxu0
    %v1194 = vadd.f32 0.0, %v1193
    %v1195 = vpop.f32.mrf.mxu0
    %1196 = vmatprep.mubr.f32.mxu0 0.0
    %1197 = vmatmul.mubr.f32.gmra.mxu0 %v893
    %v1198 = vpop.f32.mrf.mxu0
    %v1199 = vadd.f32 0.0, %v1198
    %v1200 = vpop.f32.mrf.mxu0
    %1201 = vmatprep.mubr.f32.mxu0 0.0
    %1202 = vmatmul.mubr.f32.gmra.mxu0 %v896
    %v1203 = vpop.f32.mrf.mxu0
    %v1204 = vadd.f32 0.0, %v1203
    %v1205 = vpop.f32.mrf.mxu0
    %1206 = vmatprep.mubr.f32.mxu0 0.0
    %1207 = vmatmul.mubr.f32.gmra.mxu0 %v899
    %v1208 = vpop.f32.mrf.mxu0
    %v1209 = vadd.f32 0.0, %v1208
    %v1210 = vpop.f32.mrf.mxu0
    %1211 = vmatprep.mubr.f32.mxu0 0.0
    %1212 = vmatmul.mubr.f32.gmra.mxu0 %v902
    %v1213 = vpop.f32.mrf.mxu0
    %v1214 = vadd.f32 0.0, %v1213
    %v1215 = vpop.f32.mrf.mxu0
    %1216 = vmatprep.mubr.f32.mxu0 0.0
    %1217 = vmatmul.mubr.f32.gmra.mxu0 %v905
    %v1218 = vpop.f32.mrf.mxu0
    %v1219 = vadd.f32 0.0, %v1218
    %v1220 = vpop.f32.mrf.mxu0
    %1221 = vmatprep.mubr.f32.mxu0 0.0
    %1222 = vmatmul.mubr.f32.gmra.mxu0 %v908
    %v1223 = vpop.f32.mrf.mxu0
    %v1224 = vadd.f32 0.0, %v1223
    %v1225 = vpop.f32.mrf.mxu0
    %1226 = vmatprep.mubr.f32.mxu0 0.0
    %1227 = vmatmul.mubr.f32.gmra.mxu0 %v911
    %v1228 = vpop.f32.mrf.mxu0
    %v1229 = vadd.f32 0.0, %v1228
    %v1230 = vpop.f32.mrf.mxu0
    %1231 = vdwg.mxu0
    %s1232 = scalar_lea.vmem [#allocation2], 128
    %v1233 = vld [vmem:[%s1232] sm:$0xff]
    %v1234 = vld [vmem:[%s1232 + $0x8] sm:$0xff]
    %v1235 = vld [vmem:[%s1232 + $0x10] sm:$0xff]
    %v1236 = vld [vmem:[%s1232 + $0x18] sm:$0xff]
    %v1237 = vld [vmem:[%s1232 + $0x20] sm:$0xff]
    %v1238 = vld [vmem:[%s1232 + $0x28] sm:$0xff]
    %v1239 = vld [vmem:[%s1232 + $0x30] sm:$0xff]
    %v1240 = vld [vmem:[%s1232 + $0x38] sm:$0xff]
    %1241 = vmatprep.subr.mxu0 0.0
    %1242 = vmatpush1.msra.mxu0 0.0
    %1243 = vmatprep.subr.mxu0 0.0
    %1244 = vmatpush1.msra.mxu0 0.0
    %1245 = vmatprep.subr.mxu0 0.0
    %1246 = vmatpush1.msra.mxu0 0.0
    %1247 = vmatprep.subr.mxu0 0.0
    %1248 = vmatpush1.msra.mxu0 0.0
    %1249 = vmatprep.subr.mxu0 0.0
    %1250 = vmatpush1.msra.mxu0 0.0
    %1251 = vmatprep.subr.mxu0 0.0
    %1252 = vmatpush1.msra.mxu0 0.0
    %1253 = vmatprep.subr.mxu0 0.0
    %1254 = vmatpush1.msra.mxu0 0.0
    %1255 = vmatprep.subr.mxu0 0.0
    %1256 = vmatpush1.msra.mxu0 0.0
    %1257 = vmatprep.subr.mxu0 0.0
    %1258 = vmatpush1.msra.mxu0 %v1240
    %1259 = vmatprep.subr.mxu0 0.0
    %1260 = vmatpush1.msra.mxu0 %v1239
    %1261 = vmatprep.subr.mxu0 0.0
    %1262 = vmatpush1.msra.mxu0 %v1238
    %1263 = vmatprep.subr.mxu0 0.0
    %1264 = vmatpush1.msra.mxu0 %v1237
    %1265 = vmatprep.subr.mxu0 0.0
    %1266 = vmatpush1.msra.mxu0 %v1236
    %1267 = vmatprep.subr.mxu0 0.0
    %1268 = vmatpush1.msra.mxu0 %v1235
    %1269 = vmatprep.subr.mxu0 0.0
    %1270 = vmatpush1.msra.mxu0 %v1234
    %1271 = vmatprep.subr.mxu0 0.0
    %1272 = vmatpush1.msra.mxu0 %v1233
    %1273 = vmatprep.subr.mxu0 0.0
    %1274 = vmatpush2.msra.mxu0 0.0
    %1275 = vmatprep.subr.mxu0 0.0
    %1276 = vmatpush2.msra.mxu0 0.0
    %1277 = vmatprep.subr.mxu0 0.0
    %1278 = vmatpush2.msra.mxu0 0.0
    %1279 = vmatprep.subr.mxu0 0.0
    %1280 = vmatpush2.msra.mxu0 0.0
    %1281 = vmatprep.subr.mxu0 0.0
    %1282 = vmatpush2.msra.mxu0 0.0
    %1283 = vmatprep.subr.mxu0 0.0
    %1284 = vmatpush2.msra.mxu0 0.0
    %1285 = vmatprep.subr.mxu0 0.0
    %1286 = vmatpush2.msra.mxu0 0.0
    %1287 = vmatprep.subr.mxu0 0.0
    %1288 = vmatpush2.msra.mxu0 0.0
    %1289 = vmatprep.subr.mxu0 0.0
    %1290 = vmatpush2.msra.mxu0 0.0
    %1291 = vmatprep.subr.mxu0 0.0
    %1292 = vmatpush2.msra.mxu0 0.0
    %1293 = vmatprep.subr.mxu0 0.0
    %1294 = vmatpush2.msra.mxu0 0.0
    %1295 = vmatprep.subr.mxu0 0.0
    %1296 = vmatpush2.msra.mxu0 0.0
    %1297 = vmatprep.subr.mxu0 0.0
    %1298 = vmatpush2.msra.mxu0 0.0
    %1299 = vmatprep.subr.mxu0 0.0
    %1300 = vmatpush2.msra.mxu0 0.0
    %1301 = vmatprep.subr.mxu0 0.0
    %1302 = vmatpush2.msra.mxu0 0.0
    %1303 = vmatprep.subr.mxu0 0.0
    %1304 = vmatpush2.msra.mxu0 0.0
    %1305 = vmatprep.mubr.f32.mxu0 0.0
    %1306 = vmatmul.mubr.f32.gmra.mxu0 %v872
    %v1307 = vpop.f32.mrf.mxu0
    %v1308 = vadd.f32 0.0, %v1307
    %v1309 = vpop.f32.mrf.mxu0
    %1310 = vmatprep.mubr.f32.mxu0 0.0
    %1311 = vmatmul.mubr.f32.gmra.mxu0 %v875
    %v1312 = vpop.f32.mrf.mxu0
    %v1313 = vadd.f32 0.0, %v1312
    %v1314 = vpop.f32.mrf.mxu0
    %1315 = vmatprep.mubr.f32.mxu0 0.0
    %1316 = vmatmul.mubr.f32.gmra.mxu0 %v878
    %v1317 = vpop.f32.mrf.mxu0
    %v1318 = vadd.f32 0.0, %v1317
    %v1319 = vpop.f32.mrf.mxu0
    %1320 = vmatprep.mubr.f32.mxu0 0.0
    %1321 = vmatmul.mubr.f32.gmra.mxu0 %v881
    %v1322 = vpop.f32.mrf.mxu0
    %v1323 = vadd.f32 0.0, %v1322
    %v1324 = vpop.f32.mrf.mxu0
    %1325 = vmatprep.mubr.f32.mxu0 0.0
    %1326 = vmatmul.mubr.f32.gmra.mxu0 %v884
    %v1327 = vpop.f32.mrf.mxu0
    %v1328 = vadd.f32 0.0, %v1327
    %v1329 = vpop.f32.mrf.mxu0
    %1330 = vmatprep.mubr.f32.mxu0 0.0
    %1331 = vmatmul.mubr.f32.gmra.mxu0 %v887
    %v1332 = vpop.f32.mrf.mxu0
    %v1333 = vadd.f32 0.0, %v1332
    %v1334 = vpop.f32.mrf.mxu0
    %1335 = vmatprep.mubr.f32.mxu0 0.0
    %1336 = vmatmul.mubr.f32.gmra.mxu0 %v890
    %v1337 = vpop.f32.mrf.mxu0
    %v1338 = vadd.f32 0.0, %v1337
    %v1339 = vpop.f32.mrf.mxu0
    %1340 = vmatprep.mubr.f32.mxu0 0.0
    %1341 = vmatmul.mubr.f32.gmra.mxu0 %v893
    %v1342 = vpop.f32.mrf.mxu0
    %v1343 = vadd.f32 0.0, %v1342
    %v1344 = vpop.f32.mrf.mxu0
    %1345 = vmatprep.mubr.f32.mxu0 0.0
    %1346 = vmatmul.mubr.f32.gmra.mxu0 %v896
    %v1347 = vpop.f32.mrf.mxu0
    %v1348 = vadd.f32 0.0, %v1347
    %v1349 = vpop.f32.mrf.mxu0
    %1350 = vmatprep.mubr.f32.mxu0 0.0
    %1351 = vmatmul.mubr.f32.gmra.mxu0 %v899
    %v1352 = vpop.f32.mrf.mxu0
    %v1353 = vadd.f32 0.0, %v1352
    %v1354 = vpop.f32.mrf.mxu0
    %1355 = vmatprep.mubr.f32.mxu0 0.0
    %1356 = vmatmul.mubr.f32.gmra.mxu0 %v902
    %v1357 = vpop.f32.mrf.mxu0
    %v1358 = vadd.f32 0.0, %v1357
    %v1359 = vpop.f32.mrf.mxu0
    %1360 = vmatprep.mubr.f32.mxu0 0.0
    %1361 = vmatmul.mubr.f32.gmra.mxu0 %v905
    %v1362 = vpop.f32.mrf.mxu0
    %v1363 = vadd.f32 0.0, %v1362
    %v1364 = vpop.f32.mrf.mxu0
    %1365 = vmatprep.mubr.f32.mxu0 0.0
    %1366 = vmatmul.mubr.f32.gmra.mxu0 %v908
    %v1367 = vpop.f32.mrf.mxu0
    %v1368 = vadd.f32 0.0, %v1367
    %v1369 = vpop.f32.mrf.mxu0
    %1370 = vmatprep.mubr.f32.mxu0 0.0
    %1371 = vmatmul.mubr.f32.gmra.mxu0 %v911
    %v1372 = vpop.f32.mrf.mxu0
    %v1373 = vadd.f32 0.0, %v1372
    %v1374 = vpop.f32.mrf.mxu0
    %1375 = vmatprep.mubr.f32.mxu0 0.0
    %1376 = vmatmul.mubr.f32.gmra.mxu0 %v914
    %v1377 = vpop.f32.mrf.mxu0
    %v1378 = vadd.f32 0.0, %v1377
    %v1379 = vpop.f32.mrf.mxu0
    %1380 = vdwg.mxu0
    %v1381 = vadd.f32 %v1068, 0.0
    %v1382 = vadd.f32 %v1069, %v1159
    %v1383 = vadd.f32 %v1070, %v1164
    %v1384 = vadd.f32 %v1071, %v1169
    %v1385 = vadd.f32 %v1072, %v1174
    %v1386 = vadd.f32 %v1073, %v1179
    %v1387 = vadd.f32 %v1074, %v1184
    %v1388 = vadd.f32 %v1075, %v1189
    %v1389 = vadd.f32 %v1076, %v1194
    %v1390 = vadd.f32 %v1077, %v1199
    %v1391 = vadd.f32 %v1078, %v1204
    %v1392 = vadd.f32 %v1079, %v1209
    %v1393 = vadd.f32 %v1080, %v1214
    %v1394 = vadd.f32 %v1081, %v1219
    %v1395 = vadd.f32 %v1082, %v1224
    %v1396 = vadd.f32 %v1083, %v1229
    %v1397 = vadd.f32 %v1381, %v1308
    %v1398 = vadd.f32 %v1382, %v1313
    %v1399 = vadd.f32 %v1383, %v1318
    %v1400 = vadd.f32 %v1384, %v1323
    %v1401 = vadd.f32 %v1385, %v1328
    %v1402 = vadd.f32 %v1386, %v1333
    %v1403 = vadd.f32 %v1387, %v1338
    %v1404 = vadd.f32 %v1388, %v1343
    %v1405 = vadd.f32 %v1389, %v1348
    %v1406 = vadd.f32 %v1390, %v1353
    %v1407 = vadd.f32 %v1391, %v1358
    %v1408 = vadd.f32 %v1392, %v1363
    %v1409 = vadd.f32 %v1393, %v1368
    %v1410 = vadd.f32 %v1394, %v1373
    %v1411 = vadd.f32 %v1395, %v1378
    %v1412 = vadd.f32 %v1396, 0.0
    %v1413 = vmax.f32 %v1397, 0.0
    %v1414 = vmax.f32 %v1398, 0.0
    %v1415 = vmax.f32 %v1399, 0.0
    %v1416 = vmax.f32 %v1400, 0.0
    %v1417 = vmax.f32 %v1401, 0.0
    %v1418 = vmax.f32 %v1402, 0.0
    %v1419 = vmax.f32 %v1403, 0.0
    %v1420 = vmax.f32 %v1404, 0.0
    %v1421 = vmax.f32 %v1405, 0.0
    %v1422 = vmax.f32 %v1406, 0.0
    %v1423 = vmax.f32 %v1407, 0.0
    %v1424 = vmax.f32 %v1408, 0.0
    %v1425 = vmax.f32 %v1409, 0.0
    %v1426 = vmax.f32 %v1410, 0.0
    %v1427 = vmax.f32 %v1411, 0.0
    %v1428 = vmax.f32 %v1412, 0.0
    %v1429 = vadd.f32 %v1413, %v1414
    %v1430 = vadd.f32 %v1429, %v1415
    %v1431 = vadd.f32 %v1430, %v1416
    %v1432 = vadd.f32 %v1431, %v1417
    %v1433 = vadd.f32 %v1432, %v1418
    %v1434 = vadd.f32 %v1433, %v1419
    %v1435 = vadd.f32 %v1434, %v1420
    %v1436 = vadd.f32 %v1435, %v1421
    %v1437 = vadd.f32 %v1436, %v1422
    %v1438 = vadd.f32 %v1437, %v1423
    %v1439 = vadd.f32 %v1438, %v1424
    %v1440 = vadd.f32 %v1439, %v1425
    %v1441 = vadd.f32 %v1440, %v1426
    %v1442 = vadd.f32 %v1441, %v1427
    %v1443 = vadd.f32 %v1442, %v1428
    %v1444 = vld [vmem:[#allocation5] sm:$0xff]
    %v1445 = vld [vmem:[#allocation5 + $0x8] sm:$0xff]
    %v1446 = vld [vmem:[#allocation5 + $0x10] sm:$0xff]
    %v1447 = vld [vmem:[#allocation5 + $0x18] sm:$0xff]
    %v1448 = vld [vmem:[#allocation5 + $0x20] sm:$0xff]
    %v1449 = vld [vmem:[#allocation5 + $0x28] sm:$0xff]
    %v1450 = vld [vmem:[#allocation5 + $0x30] sm:$0xff]
    %v1451 = vld [vmem:[#allocation5 + $0x38] sm:$0xff]
    %v1452 = vld [vmem:[#allocation5 + $0x40] sm:$0xff]
    %v1453 = vld [vmem:[#allocation5 + $0x48] sm:$0xff]
    %v1454 = vld [vmem:[#allocation5 + $0x50] sm:$0xff]
    %v1455 = vld [vmem:[#allocation5 + $0x58] sm:$0xff]
    %v1456 = vld [vmem:[#allocation5 + $0x60] sm:$0xff]
    %v1457 = vld [vmem:[#allocation5 + $0x68] sm:$0xff]
    %v1458 = vld [vmem:[#allocation5 + $0x70] sm:$0xff]
    %v1459 = vld [vmem:[#allocation5 + $0x78] sm:$0xff]
    %v1460 = vld [vmem:[#allocation5 + $0x80] sm:$0xff]
    %v1461 = vld [vmem:[#allocation5 + $0x88] sm:$0xff]
    %v1462 = vld [vmem:[#allocation5 + $0x90] sm:$0xff]
    %v1463 = vld [vmem:[#allocation5 + $0x98] sm:$0xff]
    %v1464 = vld [vmem:[#allocation5 + $0xa0] sm:$0xff]
    %v1465 = vld [vmem:[#allocation5 + $0xa8] sm:$0xff]
    %v1466 = vld [vmem:[#allocation5 + $0xb0] sm:$0xff]
    %v1467 = vld [vmem:[#allocation5 + $0xb8] sm:$0xff]
    %v1468 = vld [vmem:[#allocation5 + $0xc0] sm:$0xff]
    %v1469 = vld [vmem:[#allocation5 + $0xc8] sm:$0xff]
    %v1470 = vld [vmem:[#allocation5 + $0xd0] sm:$0xff]
    %v1471 = vld [vmem:[#allocation5 + $0xd8] sm:$0xff]
    %v1472 = vld [vmem:[#allocation5 + $0xe0] sm:$0xff]
    %v1473 = vld [vmem:[#allocation5 + $0xe8] sm:$0xff]
    %v1474 = vld [vmem:[#allocation5 + $0xf0] sm:$0xff]
    %v1475 = vld [vmem:[#allocation5 + $0xf8] sm:$0xff]
    %v1476 = vld [vmem:[#allocation5 + $0x100] sm:$0xff]
    %v1477 = vld [vmem:[#allocation5 + $0x108] sm:$0xff]
    %v1478 = vld [vmem:[#allocation5 + $0x110] sm:$0xff]
    %v1479 = vld [vmem:[#allocation5 + $0x118] sm:$0xff]
    %v1480 = vld [vmem:[#allocation5 + $0x120] sm:$0xff]
    %v1481 = vld [vmem:[#allocation5 + $0x128] sm:$0xff]
    %v1482 = vld [vmem:[#allocation5 + $0x130] sm:$0xff]
    %v1483 = vld [vmem:[#allocation5 + $0x138] sm:$0xff]
    %v1484 = vld [vmem:[#allocation5 + $0x140] sm:$0xff]
    %v1485 = vld [vmem:[#allocation5 + $0x148] sm:$0xff]
    %v1486 = vld [vmem:[#allocation5 + $0x150] sm:$0xff]
    %v1487 = vld [vmem:[#allocation5 + $0x158] sm:$0xff]
    %v1488 = vld [vmem:[#allocation5 + $0x160] sm:$0xff]
    %v1489 = vld [vmem:[#allocation5 + $0x168] sm:$0xff]
    %v1490 = vld [vmem:[#allocation5 + $0x170] sm:$0xff]
    %v1491 = vld [vmem:[#allocation5 + $0x178] sm:$0xff]
    %v1492 = vld [vmem:[#allocation5 + $0x180] sm:$0xff]
    %v1493 = vld [vmem:[#allocation5 + $0x188] sm:$0xff]
    %v1494 = vld [vmem:[#allocation5 + $0x190] sm:$0xff]
    %v1495 = vld [vmem:[#allocation5 + $0x198] sm:$0xff]
    %v1496 = vld [vmem:[#allocation5 + $0x1a0] sm:$0xff]
    %v1497 = vld [vmem:[#allocation5 + $0x1a8] sm:$0xff]
    %v1498 = vld [vmem:[#allocation5 + $0x1b0] sm:$0xff]
    %v1499 = vld [vmem:[#allocation5 + $0x1b8] sm:$0xff]
    %v1500 = vld [vmem:[#allocation5 + $0x1c0] sm:$0xff]
    %v1501 = vld [vmem:[#allocation5 + $0x1c8] sm:$0xff]
    %v1502 = vld [vmem:[#allocation5 + $0x1d0] sm:$0xff]
    %v1503 = vld [vmem:[#allocation5 + $0x1d8] sm:$0xff]
    %v1504 = vld [vmem:[#allocation5 + $0x1e0] sm:$0xff]
    %v1505 = vld [vmem:[#allocation5 + $0x1e8] sm:$0xff]
    %v1506 = vld [vmem:[#allocation5 + $0x1f0] sm:$0xff]
    %v1507 = vld [vmem:[#allocation5 + $0x1f8] sm:$0xff]
    %v1508 = vld [vmem:[%s8] sm:$0xf]
    %v1510 = vlaneseq
    %v1511 = vshrl.u32 %v1510, 7
    %v1512 = vsub.s32 0, %v1511
    %v1513 = vrot.slane %v1508, %v1512
    %v1514 = vlaneseq
    %v1515 = vshrl.u32 %v1514, 7
    %v1516 = vsub.s32 1, %v1515
    %v1517 = vrot.slane %v1508, %v1516
    %v1518 = vlaneseq
    %v1519 = vshrl.u32 %v1518, 7
    %v1520 = vsub.s32 2, %v1519
    %v1521 = vrot.slane %v1508, %v1520
    %v1522 = vlaneseq
    %v1523 = vshrl.u32 %v1522, 7
    %v1524 = vsub.s32 3, %v1523
    %v1525 = vrot.slane %v1508, %v1524
    %1530 = vmatprep.subr.mxu0 %v1505
    %1531 = vmatpush1.msra.mxu0 %v1504
    %1532 = vmatprep.subr.mxu0 %v1501
    %1533 = vmatpush1.msra.mxu0 %v1500
    %1534 = vmatprep.subr.mxu0 %v1497
    %1535 = vmatpush1.msra.mxu0 %v1496
    %1536 = vmatprep.subr.mxu0 %v1493
    %1537 = vmatpush1.msra.mxu0 %v1492
    %1538 = vmatprep.subr.mxu0 %v1489
    %1539 = vmatpush1.msra.mxu0 %v1488
    %1540 = vmatprep.subr.mxu0 %v1485
    %1541 = vmatpush1.msra.mxu0 %v1484
    %1542 = vmatprep.subr.mxu0 %v1481
    %1543 = vmatpush1.msra.mxu0 %v1480
    %1544 = vmatprep.subr.mxu0 %v1477
    %1545 = vmatpush1.msra.mxu0 %v1476
    %1546 = vmatprep.subr.mxu0 %v1473
    %1547 = vmatpush1.msra.mxu0 %v1472
    %1548 = vmatprep.subr.mxu0 %v1469
    %1549 = vmatpush1.msra.mxu0 %v1468
    %1550 = vmatprep.subr.mxu0 %v1465
    %1551 = vmatpush1.msra.mxu0 %v1464
    %1552 = vmatprep.subr.mxu0 %v1461
    %1553 = vmatpush1.msra.mxu0 %v1460
    %1554 = vmatprep.subr.mxu0 %v1457
    %1555 = vmatpush1.msra.mxu0 %v1456
    %1556 = vmatprep.subr.mxu0 %v1453
    %1557 = vmatpush1.msra.mxu0 %v1452
    %1558 = vmatprep.subr.mxu0 %v1449
    %1559 = vmatpush1.msra.mxu0 %v1448
    %1560 = vmatprep.subr.mxu0 %v1445
    %1561 = vmatpush1.msra.mxu0 %v1444
    %1562 = vmatprep.subr.mxu0 0.0
    %1563 = vmatpush2.msra.mxu0 0.0
    %1564 = vmatprep.subr.mxu0 0.0
    %1565 = vmatpush2.msra.mxu0 0.0
    %1566 = vmatprep.subr.mxu0 0.0
    %1567 = vmatpush2.msra.mxu0 0.0
    %1568 = vmatprep.subr.mxu0 0.0
    %1569 = vmatpush2.msra.mxu0 0.0
    %1570 = vmatprep.subr.mxu0 0.0
    %1571 = vmatpush2.msra.mxu0 0.0
    %1572 = vmatprep.subr.mxu0 0.0
    %1573 = vmatpush2.msra.mxu0 0.0
    %1574 = vmatprep.subr.mxu0 0.0
    %1575 = vmatpush2.msra.mxu0 0.0
    %1576 = vmatprep.subr.mxu0 0.0
    %1577 = vmatpush2.msra.mxu0 0.0
    %1578 = vmatprep.subr.mxu0 0.0
    %1579 = vmatpush2.msra.mxu0 0.0
    %1580 = vmatprep.subr.mxu0 0.0
    %1581 = vmatpush2.msra.mxu0 0.0
    %1582 = vmatprep.subr.mxu0 0.0
    %1583 = vmatpush2.msra.mxu0 0.0
    %1584 = vmatprep.subr.mxu0 0.0
    %1585 = vmatpush2.msra.mxu0 0.0
    %1586 = vmatprep.subr.mxu0 0.0
    %1587 = vmatpush2.msra.mxu0 0.0
    %1588 = vmatprep.subr.mxu0 0.0
    %1589 = vmatpush2.msra.mxu0 0.0
    %1590 = vmatprep.subr.mxu0 0.0
    %1591 = vmatpush2.msra.mxu0 0.0
    %1592 = vmatprep.subr.mxu0 0.0
    %1593 = vmatpush2.msra.mxu0 0.0
    %1594 = vmatprep.mubr.f32.mxu0 0.0
    %1595 = vmatmul.mubr.f32.gmra.mxu0 %v1443
    %v1596 = vpop.f32.mrf.mxu0
    %v1597 = vadd.f32 %v1513, %v1596
    %v1598 = vpop.f32.mrf.mxu0
    %v1599 = vadd.f32 %v1517, %v1598
    %1600 = vdwg.mxu0
    %1601 = vmatprep.subr.mxu0 %v1507
    %1602 = vmatpush1.msra.mxu0 %v1506
    %1603 = vmatprep.subr.mxu0 %v1503
    %1604 = vmatpush1.msra.mxu0 %v1502
    %1605 = vmatprep.subr.mxu0 %v1499
    %1606 = vmatpush1.msra.mxu0 %v1498
    %1607 = vmatprep.subr.mxu0 %v1495
    %1608 = vmatpush1.msra.mxu0 %v1494
    %1609 = vmatprep.subr.mxu0 %v1491
    %1610 = vmatpush1.msra.mxu0 %v1490
    %1611 = vmatprep.subr.mxu0 %v1487
    %1612 = vmatpush1.msra.mxu0 %v1486
    %1613 = vmatprep.subr.mxu0 %v1483
    %1614 = vmatpush1.msra.mxu0 %v1482
    %1615 = vmatprep.subr.mxu0 %v1479
    %1616 = vmatpush1.msra.mxu0 %v1478
    %1617 = vmatprep.subr.mxu0 %v1475
    %1618 = vmatpush1.msra.mxu0 %v1474
    %1619 = vmatprep.subr.mxu0 %v1471
    %1620 = vmatpush1.msra.mxu0 %v1470
    %1621 = vmatprep.subr.mxu0 %v1467
    %1622 = vmatpush1.msra.mxu0 %v1466
    %1623 = vmatprep.subr.mxu0 %v1463
    %1624 = vmatpush1.msra.mxu0 %v1462
    %1625 = vmatprep.subr.mxu0 %v1459
    %1626 = vmatpush1.msra.mxu0 %v1458
    %1627 = vmatprep.subr.mxu0 %v1455
    %1628 = vmatpush1.msra.mxu0 %v1454
    %1629 = vmatprep.subr.mxu0 %v1451
    %1630 = vmatpush1.msra.mxu0 %v1450
    %1631 = vmatprep.subr.mxu0 %v1447
    %1632 = vmatpush1.msra.mxu0 %v1446
    %1633 = vmatprep.subr.mxu0 0.0
    %1634 = vmatpush2.msra.mxu0 0.0
    %1635 = vmatprep.subr.mxu0 0.0
    %1636 = vmatpush2.msra.mxu0 0.0
    %1637 = vmatprep.subr.mxu0 0.0
    %1638 = vmatpush2.msra.mxu0 0.0
    %1639 = vmatprep.subr.mxu0 0.0
    %1640 = vmatpush2.msra.mxu0 0.0
    %1641 = vmatprep.subr.mxu0 0.0
    %1642 = vmatpush2.msra.mxu0 0.0
    %1643 = vmatprep.subr.mxu0 0.0
    %1644 = vmatpush2.msra.mxu0 0.0
    %1645 = vmatprep.subr.mxu0 0.0
    %1646 = vmatpush2.msra.mxu0 0.0
    %1647 = vmatprep.subr.mxu0 0.0
    %1648 = vmatpush2.msra.mxu0 0.0
    %1649 = vmatprep.subr.mxu0 0.0
    %1650 = vmatpush2.msra.mxu0 0.0
    %1651 = vmatprep.subr.mxu0 0.0
    %1652 = vmatpush2.msra.mxu0 0.0
    %1653 = vmatprep.subr.mxu0 0.0
    %1654 = vmatpush2.msra.mxu0 0.0
    %1655 = vmatprep.subr.mxu0 0.0
    %1656 = vmatpush2.msra.mxu0 0.0
    %1657 = vmatprep.subr.mxu0 0.0
    %1658 = vmatpush2.msra.mxu0 0.0
    %1659 = vmatprep.subr.mxu0 0.0
    %1660 = vmatpush2.msra.mxu0 0.0
    %1661 = vmatprep.subr.mxu0 0.0
    %1662 = vmatpush2.msra.mxu0 0.0
    %1663 = vmatprep.subr.mxu0 0.0
    %1664 = vmatpush2.msra.mxu0 0.0
    %1665 = vmatprep.mubr.f32.mxu0 0.0
    %1666 = vmatmul.mubr.f32.gmra.mxu0 %v1443
    %v1667 = vpop.f32.mrf.mxu0
    %v1668 = vadd.f32 %v1521, %v1667
    %v1669 = vpop.f32.mrf.mxu0
    %v1670 = vadd.f32 %v1525, %v1669
    %1671 = vdwg.mxu0
    %v1672 = vmul.f32 %v1597, %v1597
    %v1673 = vmul.f32 %v1599, %v1599
    %v1674 = vmul.f32 %v1668, %v1668
    %v1675 = vmul.f32 %v1670, %v1670
    %v1676 = vadd.f32 %v1672, %v1673
    %v1677 = vadd.f32 %v1676, %v1674
    %v1678 = vadd.f32 %v1677, %v1675
    %1679 = vadd.xlane.f32.xlu0 %v1678
    %v1680 = vpop.xlane.xlu0 %1679
    %v1681 = vmax.f32 %v1680, 1e-24
    %v1682 = vrsqrt.pop %v1681
    %v1683 = vmul.f32 %v1597, %v1682
    %v1684 = vmul.f32 %v1599, %v1682
    %v1685 = vmul.f32 %v1668, %v1682
    %v1686 = vmul.f32 %v1670, %v1682
    %1687 = vst [vmem:[#allocation7] sm:$0xff] %v1683
    %1688 = vst [vmem:[#allocation7 + $0x8] sm:$0xff] %v1684
    %1689 = vst [vmem:[#allocation7 + $0x10] sm:$0xff] %v1685
    %1690 = vst [vmem:[#allocation7 + $0x18] sm:$0xff] %v1686
    // Predicated region
    $region46: #{tpu_custom_call.1} parent=1 // pred_check
      _
    $region47: #{tpu_custom_call.1} parent=1 // pred_check_branch
      %1692 = sbr.rel (0) target = $region49
    $region48: #{tpu_custom_call.1} parent=1 // pred_region
      %s1694 = ssub.s32 512, 512
      %1695 = vsyncadd [#allocation4], %s1694
      %s1697 = sshll.u32 [#allocation7], 4
      %s1698 = int_to_ptr.vmem [resolvable:$true] %s1697
      %1700 = dma.vmem_to_hbm [thread:$0]  %s1698, 512, %s9, [#allocation4]
    $region49: #{tpu_custom_call.1} parent=1 // pred_fallthru
      _
    // Predicated region
    $region50: #{tpu_custom_call.1} parent=1 // pred_check
      _
    $region51: #{tpu_custom_call.1} parent=1 // pred_check_branch
      %1702 = sbr.rel (0) target = $region53
    $region52: #{tpu_custom_call.1} parent=1 // pred_region
      %1703 = dma.done [#allocation4], 512
    $region53: #{tpu_custom_call.1} parent=1 // pred_fallthru
      _
    %1704 = vsyncpa [#allocation3], 1
    %1705 = vsyncpa [#allocation6], 1
    %1706 = vsyncpa [#allocation4], 1

</llo_original>
